<compile_context>
chip_gen: v5e
topology: v5e:2x2
jax: 0.10.0
libtpu: 0.0.40
codegen_flags: <defaults>
</compile_context>

<pallas_src>
from functools import partial

import jax
import jax.numpy as jnp
from jax.experimental import pallas as pl
from jax.experimental.pallas import tpu as pltpu


def _downsample_kernel(x_ref, halo_ref, w_ref, b_ref, o_ref, *, fuse_kw):
    """One (batch, output-row-tile) step of the stride-2 3x3 conv.

    x_ref:    (1, 2, 2, Th, Wp2, C)  even/odd-split padded input, body rows
              [r*Th, r*Th+Th) along the Hp2 axis:
              x_ref[0, hp, wp, i, j, c] == x_pad[2*(r*Th+i)+hp, 2*j+wp, c]
    halo_ref: (1, 1, 2, 1, Wp2, C)   hp=0 plane of Hp2-row r*Th+Th (halo for kh=2)
    w_ref:    (3, 3*C, Cpad)         weight, rows within each kh ordered (kw, cin)
    b_ref:    (1, Cpad)              f32 bias (zero in padded lanes)
    o_ref:    (1, Th*Wo, Cpad)       lane-dense output tile
    """
    _, _, _, Th, Wp2, C = x_ref.shape
    _, HoWo_t, Cpad = o_ref.shape
    Wo = Wp2 - 1

    x = x_ref[...]          # (1, 2, 2, Th, Wp2, C)
    halo = halo_ref[...]    # (1, 1, 2, 1, Wp2, C)

    def row_slab(kh, wp):
        # (Th, Wp2, C) slab holding padded rows 2*(r*Th+i) + kh, i in [0, Th).
        if kh == 0:
            return x[0, 0, wp]
        if kh == 1:
            return x[0, 1, wp]
        # kh == 2: shift the hp=0 plane up by one row; halo supplies the last row.
        if Th == 1:
            return halo[0, 0, wp]
        return jnp.concatenate([x[0, 0, wp, 1:], halo[0, 0, wp]], axis=0)

    acc = jnp.zeros((HoWo_t, Cpad), jnp.float32)
    for kh in range(3):
        s0 = row_slab(kh, 0)                                   # width parity 0
        s1 = row_slab(kh, 1)                                   # width parity 1
        taps = (s0[:, 0:Wo], s1[:, 0:Wo], s0[:, 1:Wo + 1])     # kw = 0, 1, 2
        w_kh = w_ref[kh]                                       # (3*C, Cpad)
        if fuse_kw:
            # Lane-aligned C: one K=3*C dot per kh row (fills 256-deep MXU).
            patch = jnp.concatenate(taps, axis=-1).reshape(HoWo_t, 3 * C)
            acc = acc + jnp.dot(patch, w_kh,
                                preferred_element_type=jnp.float32)
        else:
            # Small / unaligned C: per-tap dots, no patch materialization.
            for kw in range(3):
                acc = acc + jnp.dot(taps[kw].reshape(HoWo_t, C),
                                    w_kh[kw * C:(kw + 1) * C],
                                    preferred_element_type=jnp.float32)

    acc = acc + b_ref[...].astype(jnp.float32)
    o_ref[...] = acc.reshape(1, HoWo_t, Cpad).astype(o_ref.dtype)


def _pick_row_tile(Ho, Wo, C, Cpad, in_itemsize, out_itemsize, requested=None):
    """Largest output-row tile that divides Ho, keeps the output block sublane
    aligned, and keeps the per-step footprint within a v7x-safe budget."""
    if requested is None:
        Wp2 = Wo + 1
        per_row = (2 * 2 * Wp2 * C * in_itemsize      # x_eo rows (both parities)
                   + Wo * 3 * C * in_itemsize         # per-kh im2col slab
                   + Wo * Cpad * 4                    # f32 accumulator
                   + Wo * Cpad * out_itemsize)        # output tile
        budget = 12 << 20   # conservative: leaves double-buffer headroom on v7x
        requested = int(max(1, min(128, budget // max(per_row, 1))))
    for t in range(min(requested, Ho), 0, -1):
        if Ho % t == 0 and ((t * Wo) % 8 == 0 or t == Ho):
            return t
    return Ho   # TODO(synk): ragged Ho would need a masked last row-tile.


def downsample(x_nchw, weight_oihw, bias, *, compute_dtype=jnp.bfloat16,
               row_tile=None):
    """Equivalent of Downsample.forward: Conv2d(dim, dim, 3, stride=2, pad=1).

    x_nchw: (B, C, H, W), weight_oihw: (C, C, 3, 3), bias: (C,)
    returns (B, C, Ho, Wo) with Ho = (H-1)//2 + 1, Wo = (W-1)//2 + 1.
    """
    B, C, H, W = x_nchw.shape
    Ho = (H - 1) // 2 + 1
    Wo = (W - 1) // 2 + 1
    Hp2, Wp2 = Ho + 1, Wo + 1
    Cpad = ((C + 127) // 128) * 128

    out_dtype = x_nchw.dtype
    cdtype = jnp.dtype(compute_dtype) if compute_dtype is not None else jnp.dtype(out_dtype)
    in_itemsize = cdtype.itemsize
    out_itemsize = jnp.dtype(out_dtype).itemsize

    Th = _pick_row_tile(Ho, Wo, C, Cpad, in_itemsize, out_itemsize, row_tile)
    n_rt = Ho // Th

    # ---- layout plumbing (XLA side) --------------------------------------
    # NCHW -> NHWC, zero-pad to (2*Hp2, 2*Wp2) and even/odd-split so every 3x3
    # tap is a contiguous slab inside the kernel.
    # TODO(synk): fuse this transpose/parity split into the producer (NHWC model)
    # to avoid the extra HBM round trip flagged in the perf review.
    x_nhwc = jnp.transpose(x_nchw, (0, 2, 3, 1)).astype(cdtype)
    x_pad = jnp.pad(
        x_nhwc, ((0, 0), (1, 2 * Ho + 1 - H), (1, 2 * Wo + 1 - W), (0, 0)))
    x_eo = x_pad.reshape(B, Hp2, 2, Wp2, 2, C).transpose(0, 2, 4, 1, 3, 5)

    # Weight OIHW -> (kh, kw, cin, cout) -> (3, 3*C, Cpad); bf16 operands hit
    # rated MXU throughput, accumulation stays f32 in-kernel. Bias stays f32.
    w = jnp.transpose(weight_oihw, (2, 3, 1, 0)).reshape(3, 3 * C, C).astype(cdtype)
    w = jnp.pad(w, ((0, 0), (0, 0), (0, Cpad - C)))
    b_pad = jnp.pad(bias.astype(jnp.float32), (0, Cpad - C)).reshape(1, Cpad)

    # Fuse the 3 kw-taps of a kh row (K = 3*C) only when C is lane-aligned.
    fuse_kw = (C % 128 == 0)

    # ---- VMEM budget ------------------------------------------------------
    body_bytes = 2 * 2 * Th * Wp2 * C * in_itemsize
    halo_bytes = 2 * Wp2 * C * in_itemsize
    w_bytes = 3 * 3 * C * Cpad * in_itemsize
    o_bytes = Th * Wo * Cpad * out_itemsize
    scratch_bytes = Th * Wo * (3 * C * in_itemsize + Cpad * 4)
    est = (2 * (body_bytes + halo_bytes + o_bytes) + 2 * w_bytes
           + scratch_bytes + 2 * Cpad * 4)
    vmem_limit = int(min(48 << 20, max(est * 3 // 2, 16 << 20)))

    grid = (B, n_rt)
    kernel = partial(_downsample_kernel, fuse_kw=fuse_kw)

    def make_call(single_buffer_params):
        # Weight/bias index maps are constant; request a single buffer for them.
        extra = {"pipeline_mode": pl.Buffered(1)} if single_buffer_params else {}
        in_specs = [
            # body: Hp2-rows [r*Th, r*Th + Th) of the even/odd-split input
            pl.BlockSpec((1, 2, 2, Th, Wp2, C),
                         lambda b, r: (b, 0, 0, r, 0, 0)),
            # halo: hp=0 plane of Hp2-row r*Th + Th (needed by the kh=2 taps)
            pl.BlockSpec((1, 1, 2, 1, Wp2, C),
                         lambda b, r: (b, 0, 0, (r + 1) * Th, 0, 0)),
            pl.BlockSpec((3, 3 * C, Cpad), lambda b, r: (0, 0, 0), **extra),
            pl.BlockSpec((1, Cpad), lambda b, r: (0, 0), **extra),
        ]
        out_specs = pl.BlockSpec((1, Th * Wo, Cpad), lambda b, r: (b, r, 0))
        return pl.pallas_call(
            kernel,
            out_shape=jax.ShapeDtypeStruct((B, Ho * Wo, Cpad), out_dtype),
            grid_spec=pltpu.PrefetchScalarGridSpec(
                num_scalar_prefetch=0, grid=grid,
                in_specs=in_specs, out_specs=out_specs),
            compiler_params=pltpu.CompilerParams(
                dimension_semantics=("parallel", "parallel"),
                vmem_limit_bytes=vmem_limit),
        )

    out = None
    err = None
    for single_buf in (True, False):
        try:
            # x_eo is passed twice: once for the body block, once for the halo row.
            out = make_call(single_buf)(x_eo, x_eo, w, b_pad)
            break
        except Exception as e:
            # pl.Buffered(1) not supported by this Pallas build -> fall back to
            # default double-buffered weight/bias (identical semantics).
            err = e
    if out is None:
        raise err

    # Drop lane padding, restore spatial dims, back to NCHW.
    out = out[..., :C].reshape(B, Ho, Wo, C)
    return jnp.transpose(out, (0, 3, 1, 2))


def _conv_reference(x, weight, bias):
    return jax.lax.conv_general_dilated(
        x, weight, window_strides=(2, 2), padding=((1, 1), (1, 1)),
        dimension_numbers=("NCHW", "OIHW", "NCHW"),
    ) + bias[None, :, None, None]


if __name__ == "__main__":
    key = jax.random.PRNGKey(0)

    # --- demo config: exercises per-tap dots, multi-row-tile grid + halo, f32 ---
    k_x, k_w, k_b = jax.random.split(jax.random.fold_in(key, 0), 3)
    B, dim, H, W = 2, 4, 16, 16
    bound = 1.0 / ((dim * 9) ** 0.5)
    x = jax.random.normal(k_x, (B, dim, H, W), dtype=jnp.float32)
    weight = jax.random.uniform(k_w, (dim, dim, 3, 3), jnp.float32, -bound, bound)
    bias = jax.random.uniform(k_b, (dim,), jnp.float32, -bound, bound)

    out = jax.block_until_ready(
        downsample(x, weight, bias, compute_dtype=jnp.float32, row_tile=4))
    ref = _conv_reference(x, weight, bias)
    assert out.shape == (B, dim, H // 2, W // 2), out.shape
    assert jnp.allclose(out, ref, atol=1e-5, rtol=1e-5), \
        float(jnp.max(jnp.abs(out - ref)))

    # --- lane-aligned config: exercises the fused K=3*C bf16 MXU path ----------
    k_x, k_w, k_b = jax.random.split(jax.random.fold_in(key, 1), 3)
    B2, dim2 = 2, 128
    bound2 = 1.0 / ((dim2 * 9) ** 0.5)
    x2 = jax.random.normal(k_x, (B2, dim2, H, W), dtype=jnp.float32)
    weight2 = jax.random.uniform(k_w, (dim2, dim2, 3, 3), jnp.float32,
                                 -bound2, bound2)
    bias2 = jax.random.uniform(k_b, (dim2,), jnp.float32, -bound2, bound2)

    out2 = jax.block_until_ready(downsample(x2, weight2, bias2))  # bf16 operands
    ref2 = _conv_reference(x2, weight2, bias2)
    assert out2.shape == (B2, dim2, H // 2, W // 2), out2.shape
    assert jnp.allclose(out2, ref2, atol=3e-2, rtol=3e-2), \
        float(jnp.max(jnp.abs(out2 - ref2)))

    print("KERNEL_OK")
</pallas_src>

<mosaic_0001>
module attributes {stable_mosaic.version = 11 : i64} {
  func.func @_downsample_kernel(%arg0: i32, %arg1: i32, %arg2: memref<1x2x2x4x9x4xf32, #tpu.memory_space<vmem>>, %arg3: memref<1x1x2x1x9x4xf32, #tpu.memory_space<vmem>>, %arg4: memref<3x12x128xf32, #tpu.memory_space<vmem>>, %arg5: memref<1x128xf32, #tpu.memory_space<vmem>>, %arg6: memref<1x32x128xf32, #tpu.memory_space<vmem>>) attributes {dimension_semantics = [#tpu.dimension_semantics<parallel>, #tpu.dimension_semantics<parallel>], iteration_bounds = array<i64: 2, 2>, scalar_prefetch = 0 : i64, scratch_operands = 0 : i64, tpu.core_type = #tpu.core_type<tc>, window_params = [{transform_indices = @transform_0, window_bounds = array<i64: 1, 2, 2, 4, 9, 4>}, {transform_indices = @transform_1, window_bounds = array<i64: 1, 1, 2, 1, 9, 4>}, {pipeline_mode = #tpu.pipeline_mode<synchronous>, transform_indices = @transform_2, window_bounds = array<i64: 3, 12, 128>}, {pipeline_mode = #tpu.pipeline_mode<synchronous>, transform_indices = @transform_3, window_bounds = array<i64: 1, 128>}, {transform_indices = @transform_4, window_bounds = array<i64: 1, 32, 128>}]} {
    %c0 = arith.constant 0 : index
    %c0_0 = arith.constant 0 : index
    %c0_1 = arith.constant 0 : index
    %c0_2 = arith.constant 0 : index
    %c0_3 = arith.constant 0 : index
    %c0_4 = arith.constant 0 : index
    %0 = vector.load %arg2[%c0, %c0_0, %c0_1, %c0_2, %c0_3, %c0_4] : memref<1x2x2x4x9x4xf32, #tpu.memory_space<vmem>>, vector<1x2x2x4x9x4xf32>
    %c0_5 = arith.constant 0 : index
    %c0_6 = arith.constant 0 : index
    %c0_7 = arith.constant 0 : index
    %c0_8 = arith.constant 0 : index
    %c0_9 = arith.constant 0 : index
    %c0_10 = arith.constant 0 : index
    %1 = vector.load %arg3[%c0_5, %c0_6, %c0_7, %c0_8, %c0_9, %c0_10] : memref<1x1x2x1x9x4xf32, #tpu.memory_space<vmem>>, vector<1x1x2x1x9x4xf32>
    %cst = arith.constant 0.000000e+00 : f32
    %2 = vector.broadcast %cst : f32 to vector<32x128xf32>
    %3 = vector.extract_strided_slice %0 {offsets = [0, 0, 0, 0, 0, 0], sizes = [1, 1, 1, 4, 9, 4], strides = [1, 1, 1, 1, 1, 1]} : vector<1x2x2x4x9x4xf32> to vector<1x1x1x4x9x4xf32>
    %4 = vector.shape_cast %3 : vector<1x1x1x4x9x4xf32> to vector<4x9x4xf32>
    %5 = vector.extract_strided_slice %0 {offsets = [0, 0, 1, 0, 0, 0], sizes = [1, 1, 1, 4, 9, 4], strides = [1, 1, 1, 1, 1, 1]} : vector<1x2x2x4x9x4xf32> to vector<1x1x1x4x9x4xf32>
    %6 = vector.shape_cast %5 : vector<1x1x1x4x9x4xf32> to vector<4x9x4xf32>
    %7 = vector.extract_strided_slice %4 {offsets = [0, 0, 0], sizes = [4, 8, 4], strides = [1, 1, 1]} : vector<4x9x4xf32> to vector<4x8x4xf32>
    %8 = vector.extract_strided_slice %6 {offsets = [0, 0, 0], sizes = [4, 8, 4], strides = [1, 1, 1]} : vector<4x9x4xf32> to vector<4x8x4xf32>
    %9 = vector.extract_strided_slice %4 {offsets = [0, 1, 0], sizes = [4, 8, 4], strides = [1, 1, 1]} : vector<4x9x4xf32> to vector<4x8x4xf32>
    %c0_11 = arith.constant 0 : index
    %c0_12 = arith.constant 0 : index
    %c0_13 = arith.constant 0 : index
    %10 = vector.load %arg4[%c0_11, %c0_12, %c0_13] : memref<3x12x128xf32, #tpu.memory_space<vmem>>, vector<1x12x128xf32>
    %11 = vector.shape_cast %10 : vector<1x12x128xf32> to vector<12x128xf32>
    %12 = vector.shape_cast %7 : vector<4x8x4xf32> to vector<32x4xf32>
    %13 = vector.extract_strided_slice %11 {offsets = [0, 0], sizes = [4, 128], strides = [1, 1]} : vector<12x128xf32> to vector<4x128xf32>
    %cst_14 = arith.constant dense<0.000000e+00> : vector<32x128xf32>
    %14 = tpu.matmul %12, %13, %cst_14 {dimension_numbers = #tpu.dot_dimension_numbers<[1], [0], [0], [1], [0, 0, 1, 1], [], []>} : vector<32x4xf32>, vector<4x128xf32>, vector<32x128xf32> -> vector<32x128xf32>
    %15 = arith.addf %2, %14 : vector<32x128xf32>
    %16 = vector.shape_cast %8 : vector<4x8x4xf32> to vector<32x4xf32>
    %17 = vector.extract_strided_slice %11 {offsets = [4, 0], sizes = [4, 128], strides = [1, 1]} : vector<12x128xf32> to vector<4x128xf32>
    %cst_15 = arith.constant dense<0.000000e+00> : vector<32x128xf32>
    %18 = tpu.matmul %16, %17, %cst_15 {dimension_numbers = #tpu.dot_dimension_numbers<[1], [0], [0], [1], [0, 0, 1, 1], [], []>} : vector<32x4xf32>, vector<4x128xf32>, vector<32x128xf32> -> vector<32x128xf32>
    %19 = arith.addf %15, %18 : vector<32x128xf32>
    %20 = vector.shape_cast %9 : vector<4x8x4xf32> to vector<32x4xf32>
    %21 = vector.extract_strided_slice %11 {offsets = [8, 0], sizes = [4, 128], strides = [1, 1]} : vector<12x128xf32> to vector<4x128xf32>
    %cst_16 = arith.constant dense<0.000000e+00> : vector<32x128xf32>
    %22 = tpu.matmul %20, %21, %cst_16 {dimension_numbers = #tpu.dot_dimension_numbers<[1], [0], [0], [1], [0, 0, 1, 1], [], []>} : vector<32x4xf32>, vector<4x128xf32>, vector<32x128xf32> -> vector<32x128xf32>
    %23 = arith.addf %19, %22 : vector<32x128xf32>
    %24 = vector.extract_strided_slice %0 {offsets = [0, 1, 0, 0, 0, 0], sizes = [1, 1, 1, 4, 9, 4], strides = [1, 1, 1, 1, 1, 1]} : vector<1x2x2x4x9x4xf32> to vector<1x1x1x4x9x4xf32>
    %25 = vector.shape_cast %24 : vector<1x1x1x4x9x4xf32> to vector<4x9x4xf32>
    %26 = vector.extract_strided_slice %0 {offsets = [0, 1, 1, 0, 0, 0], sizes = [1, 1, 1, 4, 9, 4], strides = [1, 1, 1, 1, 1, 1]} : vector<1x2x2x4x9x4xf32> to vector<1x1x1x4x9x4xf32>
    %27 = vector.shape_cast %26 : vector<1x1x1x4x9x4xf32> to vector<4x9x4xf32>
    %28 = vector.extract_strided_slice %25 {offsets = [0, 0, 0], sizes = [4, 8, 4], strides = [1, 1, 1]} : vector<4x9x4xf32> to vector<4x8x4xf32>
    %29 = vector.extract_strided_slice %27 {offsets = [0, 0, 0], sizes = [4, 8, 4], strides = [1, 1, 1]} : vector<4x9x4xf32> to vector<4x8x4xf32>
    %30 = vector.extract_strided_slice %25 {offsets = [0, 1, 0], sizes = [4, 8, 4], strides = [1, 1, 1]} : vector<4x9x4xf32> to vector<4x8x4xf32>
    %c1 = arith.constant 1 : index
    %c0_17 = arith.constant 0 : index
    %c0_18 = arith.constant 0 : index
    %31 = vector.load %arg4[%c1, %c0_17, %c0_18] : memref<3x12x128xf32, #tpu.memory_space<vmem>>, vector<1x12x128xf32>
    %32 = vector.shape_cast %31 : vector<1x12x128xf32> to vector<12x128xf32>
    %33 = vector.shape_cast %28 : vector<4x8x4xf32> to vector<32x4xf32>
    %34 = vector.extract_strided_slice %32 {offsets = [0, 0], sizes = [4, 128], strides = [1, 1]} : vector<12x128xf32> to vector<4x128xf32>
    %cst_19 = arith.constant dense<0.000000e+00> : vector<32x128xf32>
    %35 = tpu.matmul %33, %34, %cst_19 {dimension_numbers = #tpu.dot_dimension_numbers<[1], [0], [0], [1], [0, 0, 1, 1], [], []>} : vector<32x4xf32>, vector<4x128xf32>, vector<32x128xf32> -> vector<32x128xf32>
    %36 = arith.addf %23, %35 : vector<32x128xf32>
    %37 = vector.shape_cast %29 : vector<4x8x4xf32> to vector<32x4xf32>
    %38 = vector.extract_strided_slice %32 {offsets = [4, 0], sizes = [4, 128], strides = [1, 1]} : vector<12x128xf32> to vector<4x128xf32>
    %cst_20 = arith.constant dense<0.000000e+00> : vector<32x128xf32>
    %39 = tpu.matmul %37, %38, %cst_20 {dimension_numbers = #tpu.dot_dimension_numbers<[1], [0], [0], [1], [0, 0, 1, 1], [], []>} : vector<32x4xf32>, vector<4x128xf32>, vector<32x128xf32> -> vector<32x128xf32>
    %40 = arith.addf %36, %39 : vector<32x128xf32>
    %41 = vector.shape_cast %30 : vector<4x8x4xf32> to vector<32x4xf32>
    %42 = vector.extract_strided_slice %32 {offsets = [8, 0], sizes = [4, 128], strides = [1, 1]} : vector<12x128xf32> to vector<4x128xf32>
    %cst_21 = arith.constant dense<0.000000e+00> : vector<32x128xf32>
    %43 = tpu.matmul %41, %42, %cst_21 {dimension_numbers = #tpu.dot_dimension_numbers<[1], [0], [0], [1], [0, 0, 1, 1], [], []>} : vector<32x4xf32>, vector<4x128xf32>, vector<32x128xf32> -> vector<32x128xf32>
    %44 = arith.addf %40, %43 : vector<32x128xf32>
    %45 = vector.extract_strided_slice %0 {offsets = [0, 0, 0, 1, 0, 0], sizes = [1, 1, 1, 3, 9, 4], strides = [1, 1, 1, 1, 1, 1]} : vector<1x2x2x4x9x4xf32> to vector<1x1x1x3x9x4xf32>
    %46 = vector.shape_cast %45 : vector<1x1x1x3x9x4xf32> to vector<3x9x4xf32>
    %47 = vector.extract_strided_slice %1 {offsets = [0, 0, 0, 0, 0, 0], sizes = [1, 1, 1, 1, 9, 4], strides = [1, 1, 1, 1, 1, 1]} : vector<1x1x2x1x9x4xf32> to vector<1x1x1x1x9x4xf32>
    %48 = vector.shape_cast %47 : vector<1x1x1x1x9x4xf32> to vector<1x9x4xf32>
    %49 = tpu.concatenate %46, %48 in 0 : vector<3x9x4xf32>, vector<1x9x4xf32> -> vector<4x9x4xf32>
    %50 = vector.extract_strided_slice %0 {offsets = [0, 0, 1, 1, 0, 0], sizes = [1, 1, 1, 3, 9, 4], strides = [1, 1, 1, 1, 1, 1]} : vector<1x2x2x4x9x4xf32> to vector<1x1x1x3x9x4xf32>
    %51 = vector.shape_cast %50 : vector<1x1x1x3x9x4xf32> to vector<3x9x4xf32>
    %52 = vector.extract_strided_slice %1 {offsets = [0, 0, 1, 0, 0, 0], sizes = [1, 1, 1, 1, 9, 4], strides = [1, 1, 1, 1, 1, 1]} : vector<1x1x2x1x9x4xf32> to vector<1x1x1x1x9x4xf32>
    %53 = vector.shape_cast %52 : vector<1x1x1x1x9x4xf32> to vector<1x9x4xf32>
    %54 = tpu.concatenate %51, %53 in 0 : vector<3x9x4xf32>, vector<1x9x4xf32> -> vector<4x9x4xf32>
    %55 = vector.extract_strided_slice %49 {offsets = [0, 0, 0], sizes = [4, 8, 4], strides = [1, 1, 1]} : vector<4x9x4xf32> to vector<4x8x4xf32>
    %56 = vector.extract_strided_slice %54 {offsets = [0, 0, 0], sizes = [4, 8, 4], strides = [1, 1, 1]} : vector<4x9x4xf32> to vector<4x8x4xf32>
    %57 = vector.extract_strided_slice %49 {offsets = [0, 1, 0], sizes = [4, 8, 4], strides = [1, 1, 1]} : vector<4x9x4xf32> to vector<4x8x4xf32>
    %c2 = arith.constant 2 : index
    %c0_22 = arith.constant 0 : index
    %c0_23 = arith.constant 0 : index
    %58 = vector.load %arg4[%c2, %c0_22, %c0_23] : memref<3x12x128xf32, #tpu.memory_space<vmem>>, vector<1x12x128xf32>
    %59 = vector.shape_cast %58 : vector<1x12x128xf32> to vector<12x128xf32>
    %60 = vector.shape_cast %55 : vector<4x8x4xf32> to vector<32x4xf32>
    %61 = vector.extract_strided_slice %59 {offsets = [0, 0], sizes = [4, 128], strides = [1, 1]} : vector<12x128xf32> to vector<4x128xf32>
    %cst_24 = arith.constant dense<0.000000e+00> : vector<32x128xf32>
    %62 = tpu.matmul %60, %61, %cst_24 {dimension_numbers = #tpu.dot_dimension_numbers<[1], [0], [0], [1], [0, 0, 1, 1], [], []>} : vector<32x4xf32>, vector<4x128xf32>, vector<32x128xf32> -> vector<32x128xf32>
    %63 = arith.addf %44, %62 : vector<32x128xf32>
    %64 = vector.shape_cast %56 : vector<4x8x4xf32> to vector<32x4xf32>
    %65 = vector.extract_strided_slice %59 {offsets = [4, 0], sizes = [4, 128], strides = [1, 1]} : vector<12x128xf32> to vector<4x128xf32>
    %cst_25 = arith.constant dense<0.000000e+00> : vector<32x128xf32>
    %66 = tpu.matmul %64, %65, %cst_25 {dimension_numbers = #tpu.dot_dimension_numbers<[1], [0], [0], [1], [0, 0, 1, 1], [], []>} : vector<32x4xf32>, vector<4x128xf32>, vector<32x128xf32> -> vector<32x128xf32>
    %67 = arith.addf %63, %66 : vector<32x128xf32>
    %68 = vector.shape_cast %57 : vector<4x8x4xf32> to vector<32x4xf32>
    %69 = vector.extract_strided_slice %59 {offsets = [8, 0], sizes = [4, 128], strides = [1, 1]} : vector<12x128xf32> to vector<4x128xf32>
    %cst_26 = arith.constant dense<0.000000e+00> : vector<32x128xf32>
    %70 = tpu.matmul %68, %69, %cst_26 {dimension_numbers = #tpu.dot_dimension_numbers<[1], [0], [0], [1], [0, 0, 1, 1], [], []>} : vector<32x4xf32>, vector<4x128xf32>, vector<32x128xf32> -> vector<32x128xf32>
    %71 = arith.addf %67, %70 : vector<32x128xf32>
    %c0_27 = arith.constant 0 : index
    %c0_28 = arith.constant 0 : index
    %72 = vector.load %arg5[%c0_27, %c0_28] : memref<1x128xf32, #tpu.memory_space<vmem>>, vector<1x128xf32>
    %73 = vector.broadcast %72 : vector<1x128xf32> to vector<32x128xf32>
    %74 = arith.addf %71, %73 : vector<32x128xf32>
    %75 = vector.shape_cast %74 : vector<32x128xf32> to vector<1x32x128xf32>
    %c0_29 = arith.constant 0 : index
    %c0_30 = arith.constant 0 : index
    %c0_31 = arith.constant 0 : index
    %76 = vector.load %arg6[%c0_29, %c0_30, %c0_31] : memref<1x32x128xf32, #tpu.memory_space<vmem>>, vector<1x32x128xf32>
    tpu.vector_store %arg6[%c0_29, %c0_30, %c0_31], %75 {strides = array<i32>} : memref<1x32x128xf32, #tpu.memory_space<vmem>>, vector<1x32x128xf32>,
    return
  }
  func.func @transform_0(%arg0: i32, %arg1: i32) -> (i32, i32, i32, i32, i32, i32) {
    %c0_i32 = arith.constant 0 : i32
    %c0_i32_0 = arith.constant 0 : i32
    %c0_i32_1 = arith.constant 0 : i32
    %c0_i32_2 = arith.constant 0 : i32
    %c0_i32_3 = arith.constant 0 : i32
    return %arg0, %c0_i32, %c0_i32_0, %arg1, %c0_i32_1, %c0_i32_2 : i32, i32, i32, i32, i32, i32
  }
  func.func @transform_1(%arg0: i32, %arg1: i32) -> (i32, i32, i32, i32, i32, i32) {
    %c1_i32 = arith.constant 1 : i32
    %0 = arith.addi %arg1, %c1_i32 : i32
    %c4_i32 = arith.constant 4 : i32
    %1 = arith.muli %0, %c4_i32 : i32
    %c0_i32 = arith.constant 0 : i32
    %c0_i32_0 = arith.constant 0 : i32
    %c0_i32_1 = arith.constant 0 : i32
    %c0_i32_2 = arith.constant 0 : i32
    %c0_i32_3 = arith.constant 0 : i32
    return %arg0, %c0_i32, %c0_i32_0, %1, %c0_i32_1, %c0_i32_2 : i32, i32, i32, i32, i32, i32
  }
  func.func @transform_2(%arg0: i32, %arg1: i32) -> (i32, i32, i32) {
    %c0_i32 = arith.constant 0 : i32
    %c0_i32_0 = arith.constant 0 : i32
    %c0_i32_1 = arith.constant 0 : i32
    %c0_i32_2 = arith.constant 0 : i32
    return %c0_i32, %c0_i32_0, %c0_i32_1 : i32, i32, i32
  }
  func.func @transform_3(%arg0: i32, %arg1: i32) -> (i32, i32) {
    %c0_i32 = arith.constant 0 : i32
    %c0_i32_0 = arith.constant 0 : i32
    %c0_i32_1 = arith.constant 0 : i32
    return %c0_i32, %c0_i32_0 : i32, i32
  }
  func.func @transform_4(%arg0: i32, %arg1: i32) -> (i32, i32, i32) {
    %c0_i32 = arith.constant 0 : i32
    %c0_i32_0 = arith.constant 0 : i32
    return %arg0, %arg1, %c0_i32 : i32, i32, i32
  }
}

module attributes {stable_mosaic.version = 11 : i64} {
  func.func @_downsample_kernel(%arg0: i32, %arg1: i32, %arg2: memref<1x2x2x4x9x4xf32, #tpu.memory_space<vmem>>, %arg3: memref<1x1x2x1x9x4xf32, #tpu.memory_space<vmem>>, %arg4: memref<3x12x128xf32, #tpu.memory_space<vmem>>, %arg5: memref<1x128xf32, #tpu.memory_space<vmem>>, %arg6: memref<1x32x128xf32, #tpu.memory_space<vmem>>) attributes {dimension_semantics = [#tpu.dimension_semantics<parallel>, #tpu.dimension_semantics<parallel>], iteration_bounds = array<i64: 2, 2>, scalar_prefetch = 0 : i64, scratch_operands = 0 : i64, tpu.core_type = #tpu.core_type<tc>, window_params = [{transform_indices = @transform_0, window_bounds = array<i64: 1, 2, 2, 4, 9, 4>}, {transform_indices = @transform_1, window_bounds = array<i64: 1, 1, 2, 1, 9, 4>}, {pipeline_mode = #tpu.pipeline_mode<synchronous>, transform_indices = @transform_2, window_bounds = array<i64: 3, 12, 128>}, {pipeline_mode = #tpu.pipeline_mode<synchronous>, transform_indices = @transform_3, window_bounds = array<i64: 1, 128>}, {transform_indices = @transform_4, window_bounds = array<i64: 1, 32, 128>}]} {
    %c0 = arith.constant 0 : index
    %c0_0 = arith.constant 0 : index
    %c0_1 = arith.constant 0 : index
    %c0_2 = arith.constant 0 : index
    %c0_3 = arith.constant 0 : index
    %c0_4 = arith.constant 0 : index
    %0 = vector.load %arg2[%c0, %c0_0, %c0_1, %c0_2, %c0_3, %c0_4] : memref<1x2x2x4x9x4xf32, #tpu.memory_space<vmem>>, vector<1x2x2x4x9x4xf32>
    %c0_5 = arith.constant 0 : index
    %c0_6 = arith.constant 0 : index
    %c0_7 = arith.constant 0 : index
    %c0_8 = arith.constant 0 : index
    %c0_9 = arith.constant 0 : index
    %c0_10 = arith.constant 0 : index
    %1 = vector.load %arg3[%c0_5, %c0_6, %c0_7, %c0_8, %c0_9, %c0_10] : memref<1x1x2x1x9x4xf32, #tpu.memory_space<vmem>>, vector<1x1x2x1x9x4xf32>
    %cst = arith.constant 0.000000e+00 : f32
    %2 = vector.broadcast %cst : f32 to vector<32x128xf32>
    %3 = vector.extract_strided_slice %0 {offsets = [0, 0, 0, 0, 0, 0], sizes = [1, 1, 1, 4, 9, 4], strides = [1, 1, 1, 1, 1, 1]} : vector<1x2x2x4x9x4xf32> to vector<1x1x1x4x9x4xf32>
    %4 = vector.shape_cast %3 : vector<1x1x1x4x9x4xf32> to vector<4x9x4xf32>
    %5 = vector.extract_strided_slice %0 {offsets = [0, 0, 1, 0, 0, 0], sizes = [1, 1, 1, 4, 9, 4], strides = [1, 1, 1, 1, 1, 1]} : vector<1x2x2x4x9x4xf32> to vector<1x1x1x4x9x4xf32>
    %6 = vector.shape_cast %5 : vector<1x1x1x4x9x4xf32> to vector<4x9x4xf32>
    %7 = vector.extract_strided_slice %4 {offsets = [0, 0, 0], sizes = [4, 8, 4], strides = [1, 1, 1]} : vector<4x9x4xf32> to vector<4x8x4xf32>
    %8 = vector.extract_strided_slice %6 {offsets = [0, 0, 0], sizes = [4, 8, 4], strides = [1, 1, 1]} : vector<4x9x4xf32> to vector<4x8x4xf32>
    %9 = vector.extract_strided_slice %4 {offsets = [0, 1, 0], sizes = [4, 8, 4], strides = [1, 1, 1]} : vector<4x9x4xf32> to vector<4x8x4xf32>
    %c0_11 = arith.constant 0 : index
    %c0_12 = arith.constant 0 : index
    %c0_13 = arith.constant 0 : index
    %10 = vector.load %arg4[%c0_11, %c0_12, %c0_13] : memref<3x12x128xf32, #tpu.memory_space<vmem>>, vector<1x12x128xf32>
    %11 = vector.shape_cast %10 : vector<1x12x128xf32> to vector<12x128xf32>
    %12 = vector.shape_cast %7 : vector<4x8x4xf32> to vector<32x4xf32>
    %13 = vector.extract_strided_slice %11 {offsets = [0, 0], sizes = [4, 128], strides = [1, 1]} : vector<12x128xf32> to vector<4x128xf32>
    %cst_14 = arith.constant dense<0.000000e+00> : vector<32x128xf32>
    %14 = tpu.matmul %12, %13, %cst_14 {dimension_numbers = #tpu.dot_dimension_numbers<[1], [0], [0], [1], [0, 0, 1, 1], [], []>} : vector<32x4xf32>, vector<4x128xf32>, vector<32x128xf32> -> vector<32x128xf32>
    %15 = arith.addf %2, %14 : vector<32x128xf32>
    %16 = vector.shape_cast %8 : vector<4x8x4xf32> to vector<32x4xf32>
    %17 = vector.extract_strided_slice %11 {offsets = [4, 0], sizes = [4, 128], strides = [1, 1]} : vector<12x128xf32> to vector<4x128xf32>
    %cst_15 = arith.constant dense<0.000000e+00> : vector<32x128xf32>
    %18 = tpu.matmul %16, %17, %cst_15 {dimension_numbers = #tpu.dot_dimension_numbers<[1], [0], [0], [1], [0, 0, 1, 1], [], []>} : vector<32x4xf32>, vector<4x128xf32>, vector<32x128xf32> -> vector<32x128xf32>
    %19 = arith.addf %15, %18 : vector<32x128xf32>
    %20 = vector.shape_cast %9 : vector<4x8x4xf32> to vector<32x4xf32>
    %21 = vector.extract_strided_slice %11 {offsets = [8, 0], sizes = [4, 128], strides = [1, 1]} : vector<12x128xf32> to vector<4x128xf32>
    %cst_16 = arith.constant dense<0.000000e+00> : vector<32x128xf32>
    %22 = tpu.matmul %20, %21, %cst_16 {dimension_numbers = #tpu.dot_dimension_numbers<[1], [0], [0], [1], [0, 0, 1, 1], [], []>} : vector<32x4xf32>, vector<4x128xf32>, vector<32x128xf32> -> vector<32x128xf32>
    %23 = arith.addf %19, %22 : vector<32x128xf32>
    %24 = vector.extract_strided_slice %0 {offsets = [0, 1, 0, 0, 0, 0], sizes = [1, 1, 1, 4, 9, 4], strides = [1, 1, 1, 1, 1, 1]} : vector<1x2x2x4x9x4xf32> to vector<1x1x1x4x9x4xf32>
    %25 = vector.shape_cast %24 : vector<1x1x1x4x9x4xf32> to vector<4x9x4xf32>
    %26 = vector.extract_strided_slice %0 {offsets = [0, 1, 1, 0, 0, 0], sizes = [1, 1, 1, 4, 9, 4], strides = [1, 1, 1, 1, 1, 1]} : vector<1x2x2x4x9x4xf32> to vector<1x1x1x4x9x4xf32>
    %27 = vector.shape_cast %26 : vector<1x1x1x4x9x4xf32> to vector<4x9x4xf32>
    %28 = vector.extract_strided_slice %25 {offsets = [0, 0, 0], sizes = [4, 8, 4], strides = [1, 1, 1]} : vector<4x9x4xf32> to vector<4x8x4xf32>
    %29 = vector.extract_strided_slice %27 {offsets = [0, 0, 0], sizes = [4, 8, 4], strides = [1, 1, 1]} : vector<4x9x4xf32> to vector<4x8x4xf32>
    %30 = vector.extract_strided_slice %25 {offsets = [0, 1, 0], sizes = [4, 8, 4], strides = [1, 1, 1]} : vector<4x9x4xf32> to vector<4x8x4xf32>
    %c1 = arith.constant 1 : index
    %c0_17 = arith.constant 0 : index
    %c0_18 = arith.constant 0 : index
    %31 = vector.load %arg4[%c1, %c0_17, %c0_18] : memref<3x12x128xf32, #tpu.memory_space<vmem>>, vector<1x12x128xf32>
    %32 = vector.shape_cast %31 : vector<1x12x128xf32> to vector<12x128xf32>
    %33 = vector.shape_cast %28 : vector<4x8x4xf32> to vector<32x4xf32>
    %34 = vector.extract_strided_slice %32 {offsets = [0, 0], sizes = [4, 128], strides = [1, 1]} : vector<12x128xf32> to vector<4x128xf32>
    %cst_19 = arith.constant dense<0.000000e+00> : vector<32x128xf32>
    %35 = tpu.matmul %33, %34, %cst_19 {dimension_numbers = #tpu.dot_dimension_numbers<[1], [0], [0], [1], [0, 0, 1, 1], [], []>} : vector<32x4xf32>, vector<4x128xf32>, vector<32x128xf32> -> vector<32x128xf32>
    %36 = arith.addf %23, %35 : vector<32x128xf32>
    %37 = vector.shape_cast %29 : vector<4x8x4xf32> to vector<32x4xf32>
    %38 = vector.extract_strided_slice %32 {offsets = [4, 0], sizes = [4, 128], strides = [1, 1]} : vector<12x128xf32> to vector<4x128xf32>
    %cst_20 = arith.constant dense<0.000000e+00> : vector<32x128xf32>
    %39 = tpu.matmul %37, %38, %cst_20 {dimension_numbers = #tpu.dot_dimension_numbers<[1], [0], [0], [1], [0, 0, 1, 1], [], []>} : vector<32x4xf32>, vector<4x128xf32>, vector<32x128xf32> -> vector<32x128xf32>
    %40 = arith.addf %36, %39 : vector<32x128xf32>
    %41 = vector.shape_cast %30 : vector<4x8x4xf32> to vector<32x4xf32>
    %42 = vector.extract_strided_slice %32 {offsets = [8, 0], sizes = [4, 128], strides = [1, 1]} : vector<12x128xf32> to vector<4x128xf32>
    %cst_21 = arith.constant dense<0.000000e+00> : vector<32x128xf32>
    %43 = tpu.matmul %41, %42, %cst_21 {dimension_numbers = #tpu.dot_dimension_numbers<[1], [0], [0], [1], [0, 0, 1, 1], [], []>} : vector<32x4xf32>, vector<4x128xf32>, vector<32x128xf32> -> vector<32x128xf32>
    %44 = arith.addf %40, %43 : vector<32x128xf32>
    %45 = vector.extract_strided_slice %0 {offsets = [0, 0, 0, 1, 0, 0], sizes = [1, 1, 1, 3, 9, 4], strides = [1, 1, 1, 1, 1, 1]} : vector<1x2x2x4x9x4xf32> to vector<1x1x1x3x9x4xf32>
    %46 = vector.shape_cast %45 : vector<1x1x1x3x9x4xf32> to vector<3x9x4xf32>
    %47 = vector.extract_strided_slice %1 {offsets = [0, 0, 0, 0, 0, 0], sizes = [1, 1, 1, 1, 9, 4], strides = [1, 1, 1, 1, 1, 1]} : vector<1x1x2x1x9x4xf32> to vector<1x1x1x1x9x4xf32>
    %48 = vector.shape_cast %47 : vector<1x1x1x1x9x4xf32> to vector<1x9x4xf32>
    %49 = tpu.concatenate %46, %48 in 0 : vector<3x9x4xf32>, vector<1x9x4xf32> -> vector<4x9x4xf32>
    %50 = vector.extract_strided_slice %0 {offsets = [0, 0, 1, 1, 0, 0], sizes = [1, 1, 1, 3, 9, 4], strides = [1, 1, 1, 1, 1, 1]} : vector<1x2x2x4x9x4xf32> to vector<1x1x1x3x9x4xf32>
    %51 = vector.shape_cast %50 : vector<1x1x1x3x9x4xf32> to vector<3x9x4xf32>
    %52 = vector.extract_strided_slice %1 {offsets = [0, 0, 1, 0, 0, 0], sizes = [1, 1, 1, 1, 9, 4], strides = [1, 1, 1, 1, 1, 1]} : vector<1x1x2x1x9x4xf32> to vector<1x1x1x1x9x4xf32>
    %53 = vector.shape_cast %52 : vector<1x1x1x1x9x4xf32> to vector<1x9x4xf32>
    %54 = tpu.concatenate %51, %53 in 0 : vector<3x9x4xf32>, vector<1x9x4xf32> -> vector<4x9x4xf32>
    %55 = vector.extract_strided_slice %49 {offsets = [0, 0, 0], sizes = [4, 8, 4], strides = [1, 1, 1]} : vector<4x9x4xf32> to vector<4x8x4xf32>
    %56 = vector.extract_strided_slice %54 {offsets = [0, 0, 0], sizes = [4, 8, 4], strides = [1, 1, 1]} : vector<4x9x4xf32> to vector<4x8x4xf32>
    %57 = vector.extract_strided_slice %49 {offsets = [0, 1, 0], sizes = [4, 8, 4], strides = [1, 1, 1]} : vector<4x9x4xf32> to vector<4x8x4xf32>
    %c2 = arith.constant 2 : index
    %c0_22 = arith.constant 0 : index
    %c0_23 = arith.constant 0 : index
    %58 = vector.load %arg4[%c2, %c0_22, %c0_23] : memref<3x12x128xf32, #tpu.memory_space<vmem>>, vector<1x12x128xf32>
    %59 = vector.shape_cast %58 : vector<1x12x128xf32> to vector<12x128xf32>
    %60 = vector.shape_cast %55 : vector<4x8x4xf32> to vector<32x4xf32>
    %61 = vector.extract_strided_slice %59 {offsets = [0, 0], sizes = [4, 128], strides = [1, 1]} : vector<12x128xf32> to vector<4x128xf32>
    %cst_24 = arith.constant dense<0.000000e+00> : vector<32x128xf32>
    %62 = tpu.matmul %60, %61, %cst_24 {dimension_numbers = #tpu.dot_dimension_numbers<[1], [0], [0], [1], [0, 0, 1, 1], [], []>} : vector<32x4xf32>, vector<4x128xf32>, vector<32x128xf32> -> vector<32x128xf32>
    %63 = arith.addf %44, %62 : vector<32x128xf32>
    %64 = vector.shape_cast %56 : vector<4x8x4xf32> to vector<32x4xf32>
    %65 = vector.extract_strided_slice %59 {offsets = [4, 0], sizes = [4, 128], strides = [1, 1]} : vector<12x128xf32> to vector<4x128xf32>
    %cst_25 = arith.constant dense<0.000000e+00> : vector<32x128xf32>
    %66 = tpu.matmul %64, %65, %cst_25 {dimension_numbers = #tpu.dot_dimension_numbers<[1], [0], [0], [1], [0, 0, 1, 1], [], []>} : vector<32x4xf32>, vector<4x128xf32>, vector<32x128xf32> -> vector<32x128xf32>
    %67 = arith.addf %63, %66 : vector<32x128xf32>
    %68 = vector.shape_cast %57 : vector<4x8x4xf32> to vector<32x4xf32>
    %69 = vector.extract_strided_slice %59 {offsets = [8, 0], sizes = [4, 128], strides = [1, 1]} : vector<12x128xf32> to vector<4x128xf32>
    %cst_26 = arith.constant dense<0.000000e+00> : vector<32x128xf32>
    %70 = tpu.matmul %68, %69, %cst_26 {dimension_numbers = #tpu.dot_dimension_numbers<[1], [0], [0], [1], [0, 0, 1, 1], [], []>} : vector<32x4xf32>, vector<4x128xf32>, vector<32x128xf32> -> vector<32x128xf32>
    %71 = arith.addf %67, %70 : vector<32x128xf32>
    %c0_27 = arith.constant 0 : index
    %c0_28 = arith.constant 0 : index
    %72 = vector.load %arg5[%c0_27, %c0_28] : memref<1x128xf32, #tpu.memory_space<vmem>>, vector<1x128xf32>
    %73 = vector.broadcast %72 : vector<1x128xf32> to vector<32x128xf32>
    %74 = arith.addf %71, %73 : vector<32x128xf32>
    %75 = vector.shape_cast %74 : vector<32x128xf32> to vector<1x32x128xf32>
    %c0_29 = arith.constant 0 : index
    %c0_30 = arith.constant 0 : index
    %c0_31 = arith.constant 0 : index
    %76 = vector.load %arg6[%c0_29, %c0_30, %c0_31] : memref<1x32x128xf32, #tpu.memory_space<vmem>>, vector<1x32x128xf32>
    tpu.vector_store %arg6[%c0_29, %c0_30, %c0_31], %75 {strides = array<i32>} : memref<1x32x128xf32, #tpu.memory_space<vmem>>, vector<1x32x128xf32>,
    return
  }
  func.func @transform_0(%arg0: i32, %arg1: i32) -> (i32, i32, i32, i32, i32, i32) {
    %c0_i32 = arith.constant 0 : i32
    %c0_i32_0 = arith.constant 0 : i32
    %c0_i32_1 = arith.constant 0 : i32
    %c0_i32_2 = arith.constant 0 : i32
    %c0_i32_3 = arith.constant 0 : i32
    return %arg0, %c0_i32, %c0_i32_0, %arg1, %c0_i32_1, %c0_i32_2 : i32, i32, i32, i32, i32, i32
  }
  func.func @transform_1(%arg0: i32, %arg1: i32) -> (i32, i32, i32, i32, i32, i32) {
    %c1_i32 = arith.constant 1 : i32
    %0 = arith.addi %arg1, %c1_i32 : i32
    %c4_i32 = arith.constant 4 : i32
    %1 = arith.muli %0, %c4_i32 : i32
    %c0_i32 = arith.constant 0 : i32
    %c0_i32_0 = arith.constant 0 : i32
    %c0_i32_1 = arith.constant 0 : i32
    %c0_i32_2 = arith.constant 0 : i32
    %c0_i32_3 = arith.constant 0 : i32
    return %arg0, %c0_i32, %c0_i32_0, %1, %c0_i32_1, %c0_i32_2 : i32, i32, i32, i32, i32, i32
  }
  func.func @transform_2(%arg0: i32, %arg1: i32) -> (i32, i32, i32) {
    %c0_i32 = arith.constant 0 : i32
    %c0_i32_0 = arith.constant 0 : i32
    %c0_i32_1 = arith.constant 0 : i32
    %c0_i32_2 = arith.constant 0 : i32
    return %c0_i32, %c0_i32_0, %c0_i32_1 : i32, i32, i32
  }
  func.func @transform_3(%arg0: i32, %arg1: i32) -> (i32, i32) {
    %c0_i32 = arith.constant 0 : i32
    %c0_i32_0 = arith.constant 0 : i32
    %c0_i32_1 = arith.constant 0 : i32
    return %c0_i32, %c0_i32_0 : i32, i32
  }
  func.func @transform_4(%arg0: i32, %arg1: i32) -> (i32, i32, i32) {
    %c0_i32 = arith.constant 0 : i32
    %c0_i32_0 = arith.constant 0 : i32
    return %arg0, %arg1, %c0_i32 : i32, i32, i32
  }
}

</mosaic_0001>

<llo_original>
// kernel: tpu_custom_call.1
$region0: #{tpu_custom_call.1}
  #allocation0 [shape = 'u32[]', space=smem, size = 0x4, offset = 0x4, fixed_abs, tag = 'smem constant byte address 0x4 - core index']
  #allocation1 [shape = 'u32[72,128]{1,0:T(1,128)}', space=vmem, size = 0x9000, scoped, tag = 'internal scratch']
  %s0 = inlined_call_operand.vmem [shape: f32[2,2,2,9,9,4], index: 0, kind: input, shape index: {}]
  %s1 = inlined_call_operand.vmem [shape: f32[2,2,2,9,9,4], index: 1, kind: input, shape index: {}]
  %s2 = inlined_call_operand.vmem [shape: f32[3,12,128], index: 2, kind: input, shape index: {}]
  %s3 = inlined_call_operand.vmem [shape: f32[1,128], index: 3, kind: input, shape index: {}]
  %s4 = inlined_call_operand.hbm [shape: f32[2,64,128], index: 4, kind: output, shape index: {}]
  %s5 = sld [smem:[#allocation0]]
  $region139: #{tpu_custom_call.1} parent=0
    _
  %s7 = ssub.s32 1, %s5
  %s8 = scalar_select 0, %s7, %s5
  $region1: #{tpu_custom_call.1} parent=0
    #allocation2 [shape = 'u8[262144]{0}', space=vmem, size = 0x40000, scoped, tag = 'input window, operand 0']
    #allocation3 [shape = 'u8[32768]{0}', space=vmem, size = 0x8000, scoped, tag = 'input window, operand 1']
    #allocation4 [shape = 'u8[32768]{0}', space=vmem, size = 0x8000, scoped, tag = 'output window, operand 0']
    #allocation5 [shape = 's32[2]{0}', space=sflag, size = 0x8, scoped, tag = 'scoped memory for tpu_custom_call.1']
    %9 = vsyncpa [#allocation5], 0
    %s10 = scalar_lea.sflag [#allocation5], 1
    %11 = vsyncpa %s10, 0
    loop: start=0, step=1, limit=6
    $region2: #{tpu_custom_call.1} parent=1 // loop_pre_header
      _
    $region3: #{tpu_custom_call.1} parent=1 // loop_header
      %s13 = sphi 0, %s17
      %p14 = scmp.ge.s32.totalorder %s13, 6
      %s20 = sphi 0, %s32
      %s21 = sphi 0, %s28
      %s22 = sphi 0, %s20
      %s23 = sphi 0, %s21
      %s24 = sphi 0, %s22
      %s25 = sphi 0, %s23
      %s37 = sphi 0, %s39
      %s40 = sphi 0, %s37
      %s41 = sphi 0, %s40
      %s57 = sphi 0, %s41
      %s69 = sphi 0, %s71
      %s72 = sphi 0, %s69
      %s73 = sphi 0, %s72
      %s89 = sphi 0, %s73
      %s93 = sphi 0, %s93
      %s95 = sphi 0, %s93
      %s96 = sphi 0, %s95
      %s110 = sphi 0, %s96
      %s114 = sphi 0, %s114
      %s116 = sphi 0, %s114
      %s117 = sphi 0, %s116
      %s131 = sphi 0, %s117
      %s139 = sphi 0, %s141
      %s142 = sphi 0, %s139
      %s143 = sphi 0, %s142
      %s159 = sphi 0, %s143
    $region4: #{tpu_custom_call.1} parent=1 // loop_header_branch
      %16 = sbr.rel (%p14) target = $region8
    $region5: #{tpu_custom_call.1} parent=1 // loop_body
      %s18 = ssub.s32 %s13, 1
      %s19 = ssub.s32 %s13, 2
      %s26 = sadd.s32 1, %s21
      %p27 = scmp.ge.s32.totalorder %s26, 2
      %s28 = scalar_select %p27, 0, %s26
      %s29 = sadd.s32 1, %s20
      %s30 = scalar_select %p27, %s29, %s20
      %p31 = scmp.ge.s32.totalorder %s30, 2
      %s32 = scalar_select %p31, 0, %s30
      %s33 = ssub.s32 %s20, %s32
      %s34 = ssub.s32 %s21, %s28
      %s35 = sor.u32 %s33, %s34
      %p36 = scmp.eq.s32.totalorder %s35, 0
      %s38 = sadd.s32 %s37, 1
      %s39 = scalar_select %p36, %s37, %s38
      %p42 = pneg %p36
      %p43 = scmp.eq.s32.totalorder %s13, 3
      %p44 = por %p42, %p43
      %p45 = scmp.ne.s32.totalorder %s37, %s40
      %p46 = scmp.eq.s32.totalorder %s13, 0
      %p47 = por %p45, %p46
      %p48 = scmp.ne.s32.totalorder %s37, %s40
      %p49 = scmp.eq.s32.totalorder %s18, 3
      %p50 = por %p48, %p49
      %p51 = scmp.ne.s32.totalorder %s40, %s41
      %p52 = scmp.eq.s32.totalorder %s18, 0
      %p53 = por %p51, %p52
      %p54 = scmp.ne.s32.totalorder %s40, %s41
      %p55 = scmp.eq.s32.totalorder %s19, 3
      %p56 = por %p54, %p55
      %p58 = scmp.ne.s32.totalorder %s41, %s57
      %p59 = scmp.eq.s32.totalorder %s19, 0
      %p60 = por %p58, %p59
      %s61 = sadd.s32 %s21, 1
      %s62 = smul.u32 %s61, 4
      %s63 = sadd.s32 %s28, 1
      %s64 = smul.u32 %s63, 4
      %s65 = ssub.s32 %s20, %s32
      %s66 = ssub.s32 %s62, %s64
      %s67 = sor.u32 %s65, %s66
      %p68 = scmp.eq.s32.totalorder %s67, 0
      %s70 = sadd.s32 %s69, 1
      %s71 = scalar_select %p68, %s69, %s70
      %p74 = pneg %p68
      %p75 = scmp.eq.s32.totalorder %s13, 3
      %p76 = por %p74, %p75
      %p77 = scmp.ne.s32.totalorder %s69, %s72
      %p78 = scmp.eq.s32.totalorder %s13, 0
      %p79 = por %p77, %p78
      %p80 = scmp.ne.s32.totalorder %s69, %s72
      %p81 = scmp.eq.s32.totalorder %s18, 3
      %p82 = por %p80, %p81
      %p83 = scmp.ne.s32.totalorder %s72, %s73
      %p84 = scmp.eq.s32.totalorder %s18, 0
      %p85 = por %p83, %p84
      %p86 = scmp.ne.s32.totalorder %s72, %s73
      %p87 = scmp.eq.s32.totalorder %s19, 3
      %p88 = por %p86, %p87
      %p90 = scmp.ne.s32.totalorder %s73, %s89
      %p91 = scmp.eq.s32.totalorder %s19, 0
      %p92 = por %p90, %p91
      %s94 = sadd.s32 %s93, 1
      %p97 = scmp.eq.s32.totalorder %s13, 3
      %p98 = scmp.ne.s32.totalorder %s93, %s95
      %p99 = scmp.eq.s32.totalorder %s13, 0
      %p100 = por %p98, %p99
      %p101 = scmp.ne.s32.totalorder %s93, %s95
      %p102 = scmp.eq.s32.totalorder %s18, 3
      %p103 = por %p101, %p102
      %p104 = scmp.ne.s32.totalorder %s95, %s96
      %p105 = scmp.eq.s32.totalorder %s18, 0
      %p106 = por %p104, %p105
      %p107 = scmp.ne.s32.totalorder %s95, %s96
      %p108 = scmp.eq.s32.totalorder %s19, 3
      %p109 = por %p107, %p108
      %p111 = scmp.ne.s32.totalorder %s96, %s110
      %p112 = scmp.eq.s32.totalorder %s19, 0
      %p113 = por %p111, %p112
      %s115 = sadd.s32 %s114, 1
      %p118 = scmp.eq.s32.totalorder %s13, 3
      %p119 = scmp.ne.s32.totalorder %s114, %s116
      %p120 = scmp.eq.s32.totalorder %s13, 0
      %p121 = por %p119, %p120
      %p122 = scmp.ne.s32.totalorder %s114, %s116
      %p123 = scmp.eq.s32.totalorder %s18, 3
      %p124 = por %p122, %p123
      %p125 = scmp.ne.s32.totalorder %s116, %s117
      %p126 = scmp.eq.s32.totalorder %s18, 0
      %p127 = por %p125, %p126
      %p128 = scmp.ne.s32.totalorder %s116, %s117
      %p129 = scmp.eq.s32.totalorder %s19, 3
      %p130 = por %p128, %p129
      %p132 = scmp.ne.s32.totalorder %s117, %s131
      %p133 = scmp.eq.s32.totalorder %s19, 0
      %p134 = por %p132, %p133
      %s135 = ssub.s32 %s20, %s32
      %s136 = ssub.s32 %s21, %s28
      %s137 = sor.u32 %s135, %s136
      %p138 = scmp.eq.s32.totalorder %s137, 0
      %s140 = sadd.s32 %s139, 1
      %s141 = scalar_select %p138, %s139, %s140
      %p144 = pneg %p138
      %p145 = scmp.eq.s32.totalorder %s13, 3
      %p146 = por %p144, %p145
      %p147 = scmp.ne.s32.totalorder %s139, %s142
      %p148 = scmp.eq.s32.totalorder %s13, 0
      %p149 = por %p147, %p148
      %p150 = scmp.ne.s32.totalorder %s139, %s142
      %p151 = scmp.eq.s32.totalorder %s18, 3
      %p152 = por %p150, %p151
      %p153 = scmp.ne.s32.totalorder %s142, %s143
      %p154 = scmp.eq.s32.totalorder %s18, 0
      %p155 = por %p153, %p154
      %p156 = scmp.ne.s32.totalorder %s142, %s143
      %p157 = scmp.eq.s32.totalorder %s19, 3
      %p158 = por %p156, %p157
      %p160 = scmp.ne.s32.totalorder %s143, %s159
      %p161 = scmp.eq.s32.totalorder %s19, 0
      %p162 = por %p160, %p161
      %p163 = scmp.le.s32.totalorder 1, %s13
      %p164 = scmp.lt.s32.totalorder %s13, 5
      %p165 = pnand %p163, %p164
      %p166 = pneg %p165
      // Predicated region
      $region9: #{tpu_custom_call.1} parent=5 // pred_check
        _
      $region10: #{tpu_custom_call.1} parent=5 // pred_check_branch
        %168 = sbr.rel (%p165) target = $region12
      $region11: #{tpu_custom_call.1} parent=5 // pred_region
        %s169 = ssub.s32 %s13, 1
        // Predicated region
        $region13: #{tpu_custom_call.1} parent=11 // pred_check
          %p170 = pneg %p106
        $region14: #{tpu_custom_call.1} parent=11 // pred_check_branch
          %172 = sbr.rel (%p170) target = $region16
        $region15: #{tpu_custom_call.1} parent=11 // pred_region
          _
        $region16: #{tpu_custom_call.1} parent=11 // pred_fallthru
          _
        // Predicated region
        $region17: #{tpu_custom_call.1} parent=11 // pred_check
          %p173 = pneg %p127
        $region18: #{tpu_custom_call.1} parent=11 // pred_check_branch
          %175 = sbr.rel (%p173) target = $region20
        $region19: #{tpu_custom_call.1} parent=11 // pred_region
          _
        $region20: #{tpu_custom_call.1} parent=11 // pred_fallthru
          _
      $region12: #{tpu_custom_call.1} parent=5 // pred_fallthru
        _
      %p176 = scmp.lt.s32.totalorder %s13, 4
      // Predicated region
      $region21: #{tpu_custom_call.1} parent=5 // pred_check
        %p177 = pneg %p176
      $region22: #{tpu_custom_call.1} parent=5 // pred_check_branch
        %179 = sbr.rel (%p177) target = $region24
      $region23: #{tpu_custom_call.1} parent=5 // pred_region
        // Predicated region
        $region25: #{tpu_custom_call.1} parent=23 // pred_check
          %p180 = pneg %p47
        $region26: #{tpu_custom_call.1} parent=23 // pred_check_branch
          %182 = sbr.rel (%p180) target = $region28
        $region27: #{tpu_custom_call.1} parent=23 // pred_region
          %s183 = sand.u32 %s37, 1
          %s184 = sand.u32 %s37, 1
          %s185 = smul.addr %s184, 256
          %s186 = scalar_lea.vmem [#allocation2], %s185
          %s187 = smul.u32 4, %s21
          %s188 = ssub.s32 9, %s187
          %p189 = scmp.lt.s32.totalorder %s188, 4
          %s190 = scalar_select %p189, %s188, 4
          %s191 = smul.u32 32, %s190
          %s192 = smul.u32 %s191, 2
          %p193 = scmp.ne.s32.totalorder 0, %s192
          %s194 = smul.addr %s187, 2
          %s195 = smul.addr %s20, 72
          %s196 = sadd.s32 %s194, %s195
          %s197 = smul.addr %s196, 8
          %s198 = scalar_lea.vmem %s0, %s197
          %s199 = smul.u32 %s190, 2
          // Predicated region
          $region29: #{tpu_custom_call.1} parent=27 // pred_check
            %p200 = pneg %p193
          $region30: #{tpu_custom_call.1} parent=27 // pred_check_branch
            %202 = sbr.rel (%p200) target = $region32
          $region31: #{tpu_custom_call.1} parent=27 // pred_region
            // Predicated region
            $region33: #{tpu_custom_call.1} parent=31 // pred_check
              _
            $region34: #{tpu_custom_call.1} parent=31 // pred_check_branch
              %204 = sbr.rel (0) target = $region36
            $region35: #{tpu_custom_call.1} parent=31 // pred_region
              // Predicated region
              $region55: #{tpu_custom_call.1} parent=35 // pred_check
                _
              $region56: #{tpu_custom_call.1} parent=35 // pred_check_branch
                %322 = sbr.rel (0) target = $region58
              $region57: #{tpu_custom_call.1} parent=35 // pred_region
                %s323 = sshrl.u32 %s199, 3
                // While loop
                $region59: #{tpu_custom_call.1} parent=57 // loop_pre_header
                  _
                $region60: #{tpu_custom_call.1} parent=57 // loop_header
                  %s325 = sphi 0, %s327
                  %p326 = scmp.ge.s32.totalorder %s325, %s323
                  %s330 = sphi 0, %s399
                  %s331 = sphi %s198, %s402
                  %s332 = sphi %s186, %s403
                $region61: #{tpu_custom_call.1} parent=57 // loop_header_branch
                  %329 = sbr.rel (%p326) target = $region65
                $region62: #{tpu_custom_call.1} parent=57 // loop_body
                  %v333 = vld [vmem:[%s331] sm:$0xff]
                  %334 = vst [vmem:[%s332] sm:$0xff] %v333
                  %v335 = vld [vmem:[%s331 + $0x8] sm:$0xff]
                  %336 = vst [vmem:[%s332 + $0x8] sm:$0xff] %v335
                  %v337 = vld [vmem:[%s331 + $0x10] sm:$0xff]
                  %338 = vst [vmem:[%s332 + $0x10] sm:$0xff] %v337
                  %v339 = vld [vmem:[%s331 + $0x18] sm:$0xff]
                  %340 = vst [vmem:[%s332 + $0x18] sm:$0xff] %v339
                  %v341 = vld [vmem:[%s331 + $0x20] sm:$0xff]
                  %342 = vst [vmem:[%s332 + $0x20] sm:$0xff] %v341
                  %v343 = vld [vmem:[%s331 + $0x28] sm:$0xff]
                  %344 = vst [vmem:[%s332 + $0x28] sm:$0xff] %v343
                  %v345 = vld [vmem:[%s331 + $0x30] sm:$0xff]
                  %346 = vst [vmem:[%s332 + $0x30] sm:$0xff] %v345
                  %v347 = vld [vmem:[%s331 + $0x38] sm:$0xff]
                  %348 = vst [vmem:[%s332 + $0x38] sm:$0xff] %v347
                  %v349 = vld [vmem:[%s331 + $0x90] sm:$0xff]
                  %350 = vst [vmem:[%s332 + $0x40] sm:$0xff] %v349
                  %v351 = vld [vmem:[%s331 + $0x98] sm:$0xff]
                  %352 = vst [vmem:[%s332 + $0x48] sm:$0xff] %v351
                  %v353 = vld [vmem:[%s331 + $0xa0] sm:$0xff]
                  %354 = vst [vmem:[%s332 + $0x50] sm:$0xff] %v353
                  %v355 = vld [vmem:[%s331 + $0xa8] sm:$0xff]
                  %356 = vst [vmem:[%s332 + $0x58] sm:$0xff] %v355
                  %v357 = vld [vmem:[%s331 + $0xb0] sm:$0xff]
                  %358 = vst [vmem:[%s332 + $0x60] sm:$0xff] %v357
                  %v359 = vld [vmem:[%s331 + $0xb8] sm:$0xff]
                  %360 = vst [vmem:[%s332 + $0x68] sm:$0xff] %v359
                  %v361 = vld [vmem:[%s331 + $0xc0] sm:$0xff]
                  %362 = vst [vmem:[%s332 + $0x70] sm:$0xff] %v361
                  %v363 = vld [vmem:[%s331 + $0xc8] sm:$0xff]
                  %364 = vst [vmem:[%s332 + $0x78] sm:$0xff] %v363
                  %v365 = vld [vmem:[%s331 + $0x120] sm:$0xff]
                  %366 = vst [vmem:[%s332 + $0x80] sm:$0xff] %v365
                  %v367 = vld [vmem:[%s331 + $0x128] sm:$0xff]
                  %368 = vst [vmem:[%s332 + $0x88] sm:$0xff] %v367
                  %v369 = vld [vmem:[%s331 + $0x130] sm:$0xff]
                  %370 = vst [vmem:[%s332 + $0x90] sm:$0xff] %v369
                  %v371 = vld [vmem:[%s331 + $0x138] sm:$0xff]
                  %372 = vst [vmem:[%s332 + $0x98] sm:$0xff] %v371
                  %v373 = vld [vmem:[%s331 + $0x140] sm:$0xff]
                  %374 = vst [vmem:[%s332 + $0xa0] sm:$0xff] %v373
                  %v375 = vld [vmem:[%s331 + $0x148] sm:$0xff]
                  %376 = vst [vmem:[%s332 + $0xa8] sm:$0xff] %v375
                  %v377 = vld [vmem:[%s331 + $0x150] sm:$0xff]
                  %378 = vst [vmem:[%s332 + $0xb0] sm:$0xff] %v377
                  %v379 = vld [vmem:[%s331 + $0x158] sm:$0xff]
                  %380 = vst [vmem:[%s332 + $0xb8] sm:$0xff] %v379
                  %v381 = vld [vmem:[%s331 + $0x1b0] sm:$0xff]
                  %382 = vst [vmem:[%s332 + $0xc0] sm:$0xff] %v381
                  %v383 = vld [vmem:[%s331 + $0x1b8] sm:$0xff]
                  %384 = vst [vmem:[%s332 + $0xc8] sm:$0xff] %v383
                  %v385 = vld [vmem:[%s331 + $0x1c0] sm:$0xff]
                  %386 = vst [vmem:[%s332 + $0xd0] sm:$0xff] %v385
                  %v387 = vld [vmem:[%s331 + $0x1c8] sm:$0xff]
                  %388 = vst [vmem:[%s332 + $0xd8] sm:$0xff] %v387
                  %v389 = vld [vmem:[%s331 + $0x1d0] sm:$0xff]
                  %390 = vst [vmem:[%s332 + $0xe0] sm:$0xff] %v389
                  %v391 = vld [vmem:[%s331 + $0x1d8] sm:$0xff]
                  %392 = vst [vmem:[%s332 + $0xe8] sm:$0xff] %v391
                  %v393 = vld [vmem:[%s331 + $0x1e0] sm:$0xff]
                  %394 = vst [vmem:[%s332 + $0xf0] sm:$0xff] %v393
                  %v395 = vld [vmem:[%s331 + $0x1e8] sm:$0xff]
                  %396 = vst [vmem:[%s332 + $0xf8] sm:$0xff] %v395
                  %s397 = sadd.s32 1, %s330
                  %p398 = scmp.ge.s32.totalorder %s397, %s323
                  %s399 = scalar_select %p398, 0, %s397
                  %s400 = smul.u32 %s399, 64
                  %s401 = smul.u32 %s399, 64
                  %s402 = scalar_lea.vmem %s198, %s400
                  %s403 = scalar_lea.vmem %s186, %s401 [#allocation2]
                $region63: #{tpu_custom_call.1} parent=57 // loop_footer
                  %s327 = sadd.s32 %s325, 1
                $region64: #{tpu_custom_call.1} parent=57 // loop_footer_branch
                  %324 = sbr.rel target = $region60
                $region65: #{tpu_custom_call.1} parent=57 // loop_exit
                  _
                %s404 = sshrl.u32 %s199, 3
                %s405 = sand.u32 %s199, 7
                %s406 = smul.u32 %s404, 8
                %s407 = smul.u32 8, %s406
                %s408 = scalar_lea.vmem %s198, %s407
                %s409 = smul.u32 8, %s406
                %s410 = scalar_lea.vmem %s186, %s409 [#allocation2]
                // While loop
                $region66: #{tpu_custom_call.1} parent=57 // loop_pre_header
                  _
                $region67: #{tpu_custom_call.1} parent=57 // loop_header
                  %s412 = sphi 0, %s414
                  %p413 = scmp.ge.s32.totalorder %s412, %s405
                  %s417 = sphi 0, %s430
                  %s418 = sphi %s408, %s433
                  %s419 = sphi %s410, %s434
                $region68: #{tpu_custom_call.1} parent=57 // loop_header_branch
                  %416 = sbr.rel (%p413) target = $region72
                $region69: #{tpu_custom_call.1} parent=57 // loop_body
                  %v420 = vld [vmem:[%s418] sm:$0xff]
                  %421 = vst [vmem:[%s419] sm:$0xff] %v420
                  %v422 = vld [vmem:[%s418 + $0x90] sm:$0xff]
                  %423 = vst [vmem:[%s419 + $0x40] sm:$0xff] %v422
                  %v424 = vld [vmem:[%s418 + $0x120] sm:$0xff]
                  %425 = vst [vmem:[%s419 + $0x80] sm:$0xff] %v424
                  %v426 = vld [vmem:[%s418 + $0x1b0] sm:$0xff]
                  %427 = vst [vmem:[%s419 + $0xc0] sm:$0xff] %v426
                  %s428 = sadd.s32 1, %s417
                  %p429 = scmp.ge.s32.totalorder %s428, %s405
                  %s430 = scalar_select %p429, 0, %s428
                  %s431 = smul.u32 %s430, 8
                  %s432 = smul.u32 %s430, 8
                  %s433 = scalar_lea.vmem %s408, %s431
                  %s434 = scalar_lea.vmem %s410, %s432 [#allocation2]
                $region70: #{tpu_custom_call.1} parent=57 // loop_footer
                  %s414 = sadd.s32 %s412, 1
                $region71: #{tpu_custom_call.1} parent=57 // loop_footer_branch
                  %411 = sbr.rel target = $region67
                $region72: #{tpu_custom_call.1} parent=57 // loop_exit
                  _
              $region58: #{tpu_custom_call.1} parent=35 // pred_fallthru
                _
              // Predicated region
              $region73: #{tpu_custom_call.1} parent=35 // pred_check
                _
              $region74: #{tpu_custom_call.1} parent=35 // pred_check_branch
                %436 = sbr.rel target = $region76
              $region75: #{tpu_custom_call.1} parent=35 // pred_region
                _
              $region76: #{tpu_custom_call.1} parent=35 // pred_fallthru
                _
            $region36: #{tpu_custom_call.1} parent=31 // pred_fallthru
              _
            // Predicated region
            $region37: #{tpu_custom_call.1} parent=31 // pred_check
              _
            $region38: #{tpu_custom_call.1} parent=31 // pred_check_branch
              %206 = sbr.rel target = $region40
            $region39: #{tpu_custom_call.1} parent=31 // pred_region
              %s208 = ssub.s32 256, 1
              %s209 = sshrl.u32 %s199, 3
              // While loop
              $region41: #{tpu_custom_call.1} parent=39 // loop_pre_header
                _
              $region42: #{tpu_custom_call.1} parent=39 // loop_header
                %s211 = sphi 0, %s213
                %p212 = scmp.ge.s32.totalorder %s211, %s209
                %s216 = sphi 0, %s285
                %s217 = sphi %s198, %s288
                %s218 = sphi %s186, %s289
              $region43: #{tpu_custom_call.1} parent=39 // loop_header_branch
                %215 = sbr.rel (%p212) target = $region47
              $region44: #{tpu_custom_call.1} parent=39 // loop_body
                %v219 = vld [vmem:[%s217] sm:%s208]
                %220 = vst [vmem:[%s218] sm:%s208] %v219
                %v221 = vld [vmem:[%s217 + $0x8] sm:%s208]
                %222 = vst [vmem:[%s218 + $0x8] sm:%s208] %v221
                %v223 = vld [vmem:[%s217 + $0x10] sm:%s208]
                %224 = vst [vmem:[%s218 + $0x10] sm:%s208] %v223
                %v225 = vld [vmem:[%s217 + $0x18] sm:%s208]
                %226 = vst [vmem:[%s218 + $0x18] sm:%s208] %v225
                %v227 = vld [vmem:[%s217 + $0x20] sm:%s208]
                %228 = vst [vmem:[%s218 + $0x20] sm:%s208] %v227
                %v229 = vld [vmem:[%s217 + $0x28] sm:%s208]
                %230 = vst [vmem:[%s218 + $0x28] sm:%s208] %v229
                %v231 = vld [vmem:[%s217 + $0x30] sm:%s208]
                %232 = vst [vmem:[%s218 + $0x30] sm:%s208] %v231
                %v233 = vld [vmem:[%s217 + $0x38] sm:%s208]
                %234 = vst [vmem:[%s218 + $0x38] sm:%s208] %v233
                %v235 = vld [vmem:[%s217 + $0x90] sm:%s208]
                %236 = vst [vmem:[%s218 + $0x40] sm:%s208] %v235
                %v237 = vld [vmem:[%s217 + $0x98] sm:%s208]
                %238 = vst [vmem:[%s218 + $0x48] sm:%s208] %v237
                %v239 = vld [vmem:[%s217 + $0xa0] sm:%s208]
                %240 = vst [vmem:[%s218 + $0x50] sm:%s208] %v239
                %v241 = vld [vmem:[%s217 + $0xa8] sm:%s208]
                %242 = vst [vmem:[%s218 + $0x58] sm:%s208] %v241
                %v243 = vld [vmem:[%s217 + $0xb0] sm:%s208]
                %244 = vst [vmem:[%s218 + $0x60] sm:%s208] %v243
                %v245 = vld [vmem:[%s217 + $0xb8] sm:%s208]
                %246 = vst [vmem:[%s218 + $0x68] sm:%s208] %v245
                %v247 = vld [vmem:[%s217 + $0xc0] sm:%s208]
                %248 = vst [vmem:[%s218 + $0x70] sm:%s208] %v247
                %v249 = vld [vmem:[%s217 + $0xc8] sm:%s208]
                %250 = vst [vmem:[%s218 + $0x78] sm:%s208] %v249
                %v251 = vld [vmem:[%s217 + $0x120] sm:%s208]
                %252 = vst [vmem:[%s218 + $0x80] sm:%s208] %v251
                %v253 = vld [vmem:[%s217 + $0x128] sm:%s208]
                %254 = vst [vmem:[%s218 + $0x88] sm:%s208] %v253
                %v255 = vld [vmem:[%s217 + $0x130] sm:%s208]
                %256 = vst [vmem:[%s218 + $0x90] sm:%s208] %v255
                %v257 = vld [vmem:[%s217 + $0x138] sm:%s208]
                %258 = vst [vmem:[%s218 + $0x98] sm:%s208] %v257
                %v259 = vld [vmem:[%s217 + $0x140] sm:%s208]
                %260 = vst [vmem:[%s218 + $0xa0] sm:%s208] %v259
                %v261 = vld [vmem:[%s217 + $0x148] sm:%s208]
                %262 = vst [vmem:[%s218 + $0xa8] sm:%s208] %v261
                %v263 = vld [vmem:[%s217 + $0x150] sm:%s208]
                %264 = vst [vmem:[%s218 + $0xb0] sm:%s208] %v263
                %v265 = vld [vmem:[%s217 + $0x158] sm:%s208]
                %266 = vst [vmem:[%s218 + $0xb8] sm:%s208] %v265
                %v267 = vld [vmem:[%s217 + $0x1b0] sm:%s208]
                %268 = vst [vmem:[%s218 + $0xc0] sm:%s208] %v267
                %v269 = vld [vmem:[%s217 + $0x1b8] sm:%s208]
                %270 = vst [vmem:[%s218 + $0xc8] sm:%s208] %v269
                %v271 = vld [vmem:[%s217 + $0x1c0] sm:%s208]
                %272 = vst [vmem:[%s218 + $0xd0] sm:%s208] %v271
                %v273 = vld [vmem:[%s217 + $0x1c8] sm:%s208]
                %274 = vst [vmem:[%s218 + $0xd8] sm:%s208] %v273
                %v275 = vld [vmem:[%s217 + $0x1d0] sm:%s208]
                %276 = vst [vmem:[%s218 + $0xe0] sm:%s208] %v275
                %v277 = vld [vmem:[%s217 + $0x1d8] sm:%s208]
                %278 = vst [vmem:[%s218 + $0xe8] sm:%s208] %v277
                %v279 = vld [vmem:[%s217 + $0x1e0] sm:%s208]
                %280 = vst [vmem:[%s218 + $0xf0] sm:%s208] %v279
                %v281 = vld [vmem:[%s217 + $0x1e8] sm:%s208]
                %282 = vst [vmem:[%s218 + $0xf8] sm:%s208] %v281
                %s283 = sadd.s32 1, %s216
                %p284 = scmp.ge.s32.totalorder %s283, %s209
                %s285 = scalar_select %p284, 0, %s283
                %s286 = smul.u32 %s285, 64
                %s287 = smul.u32 %s285, 64
                %s288 = scalar_lea.vmem %s198, %s286
                %s289 = scalar_lea.vmem %s186, %s287 [#allocation2]
              $region45: #{tpu_custom_call.1} parent=39 // loop_footer
                %s213 = sadd.s32 %s211, 1
              $region46: #{tpu_custom_call.1} parent=39 // loop_footer_branch
                %210 = sbr.rel target = $region42
              $region47: #{tpu_custom_call.1} parent=39 // loop_exit
                _
              %s290 = sshrl.u32 %s199, 3
              %s291 = sand.u32 %s199, 7
              %s292 = smul.u32 %s290, 8
              %s293 = smul.u32 8, %s292
              %s294 = scalar_lea.vmem %s198, %s293
              %s295 = smul.u32 8, %s292
              %s296 = scalar_lea.vmem %s186, %s295 [#allocation2]
              // While loop
              $region48: #{tpu_custom_call.1} parent=39 // loop_pre_header
                _
              $region49: #{tpu_custom_call.1} parent=39 // loop_header
                %s298 = sphi 0, %s300
                %p299 = scmp.ge.s32.totalorder %s298, %s291
                %s303 = sphi 0, %s316
                %s304 = sphi %s294, %s319
                %s305 = sphi %s296, %s320
              $region50: #{tpu_custom_call.1} parent=39 // loop_header_branch
                %302 = sbr.rel (%p299) target = $region54
              $region51: #{tpu_custom_call.1} parent=39 // loop_body
                %v306 = vld [vmem:[%s304] sm:%s208]
                %307 = vst [vmem:[%s305] sm:%s208] %v306
                %v308 = vld [vmem:[%s304 + $0x90] sm:%s208]
                %309 = vst [vmem:[%s305 + $0x40] sm:%s208] %v308
                %v310 = vld [vmem:[%s304 + $0x120] sm:%s208]
                %311 = vst [vmem:[%s305 + $0x80] sm:%s208] %v310
                %v312 = vld [vmem:[%s304 + $0x1b0] sm:%s208]
                %313 = vst [vmem:[%s305 + $0xc0] sm:%s208] %v312
                %s314 = sadd.s32 1, %s303
                %p315 = scmp.ge.s32.totalorder %s314, %s291
                %s316 = scalar_select %p315, 0, %s314
                %s317 = smul.u32 %s316, 8
                %s318 = smul.u32 %s316, 8
                %s319 = scalar_lea.vmem %s294, %s317
                %s320 = scalar_lea.vmem %s296, %s318 [#allocation2]
              $region52: #{tpu_custom_call.1} parent=39 // loop_footer
                %s300 = sadd.s32 %s298, 1
              $region53: #{tpu_custom_call.1} parent=39 // loop_footer_branch
                %297 = sbr.rel target = $region49
              $region54: #{tpu_custom_call.1} parent=39 // loop_exit
                _
            $region40: #{tpu_custom_call.1} parent=31 // pred_fallthru
              _
          $region32: #{tpu_custom_call.1} parent=27 // pred_fallthru
            _
          %437 = vnop
        $region28: #{tpu_custom_call.1} parent=23 // pred_fallthru
          _
        // Predicated region
        $region77: #{tpu_custom_call.1} parent=23 // pred_check
          %p438 = pneg %p79
        $region78: #{tpu_custom_call.1} parent=23 // pred_check_branch
          %440 = sbr.rel (%p438) target = $region80
        $region79: #{tpu_custom_call.1} parent=23 // pred_region
          %s441 = sand.u32 %s69, 1
          %s442 = sand.u32 %s69, 1
          %s443 = smul.addr %s442, 32
          %s444 = scalar_lea.vmem [#allocation3], %s443
          %s445 = sadd.s32 %s21, 1
          %s446 = smul.u32 %s445, 4
          %s447 = smul.addr %s446, 2
          %s448 = smul.addr %s20, 72
          %s449 = sadd.s32 %s447, %s448
          %s450 = smul.addr %s449, 8
          %s451 = scalar_lea.vmem %s1, %s450
          // Predicated region
          $region81: #{tpu_custom_call.1} parent=79 // pred_check
            _
          $region82: #{tpu_custom_call.1} parent=79 // pred_check_branch
            %453 = sbr.rel (0) target = $region84
          $region83: #{tpu_custom_call.1} parent=79 // pred_region
            // Predicated region
            $region85: #{tpu_custom_call.1} parent=83 // pred_check
              _
            $region86: #{tpu_custom_call.1} parent=83 // pred_check_branch
              %455 = sbr.rel (0) target = $region88
            $region87: #{tpu_custom_call.1} parent=83 // pred_region
              // Predicated region
              $region100: #{tpu_custom_call.1} parent=87 // pred_check
                _
              $region101: #{tpu_custom_call.1} parent=87 // pred_check_branch
                %477 = sbr.rel (0) target = $region103
              $region102: #{tpu_custom_call.1} parent=87 // pred_region
                loop: start=0, step=1, limit=1
                $region104: #{tpu_custom_call.1} parent=102 // loop_pre_header
                  _
                $region105: #{tpu_custom_call.1} parent=102 // loop_header
                  %s479 = sphi 0, %s483
                  %p480 = scmp.ge.s32.totalorder %s479, 1
                  %s484 = sphi %s451, %s451
                  %s485 = sphi %s444, %s444
                $region106: #{tpu_custom_call.1} parent=102 // loop_header_branch
                  %482 = sbr.rel (%p480) target = $region110
                $region107: #{tpu_custom_call.1} parent=102 // loop_body
                  %v486 = vld [vmem:[%s484] sm:$0xff]
                  %487 = vst [vmem:[%s485] sm:$0xff] %v486
                  %v488 = vld [vmem:[%s484 + $0x8] sm:$0xff]
                  %489 = vst [vmem:[%s485 + $0x8] sm:$0xff] %v488
                  %v490 = vld [vmem:[%s484 + $0x90] sm:$0xff]
                  %491 = vst [vmem:[%s485 + $0x10] sm:$0xff] %v490
                  %v492 = vld [vmem:[%s484 + $0x98] sm:$0xff]
                  %493 = vst [vmem:[%s485 + $0x18] sm:$0xff] %v492
                $region108: #{tpu_custom_call.1} parent=102 // loop_footer
                  %s483 = sadd.s32 1, %s479
                $region109: #{tpu_custom_call.1} parent=102 // loop_footer_branch
                  %478 = sbr.rel target = $region105
                $region110: #{tpu_custom_call.1} parent=102 // loop_exit
                  _
              $region103: #{tpu_custom_call.1} parent=87 // pred_fallthru
                _
              // Predicated region
              $region111: #{tpu_custom_call.1} parent=87 // pred_check
                _
              $region112: #{tpu_custom_call.1} parent=87 // pred_check_branch
                %495 = sbr.rel target = $region114
              $region113: #{tpu_custom_call.1} parent=87 // pred_region
                _
              $region114: #{tpu_custom_call.1} parent=87 // pred_fallthru
                _
            $region88: #{tpu_custom_call.1} parent=83 // pred_fallthru
              _
            // Predicated region
            $region89: #{tpu_custom_call.1} parent=83 // pred_check
              _
            $region90: #{tpu_custom_call.1} parent=83 // pred_check_branch
              %457 = sbr.rel target = $region92
            $region91: #{tpu_custom_call.1} parent=83 // pred_region
              %s459 = ssub.s32 256, 1
              loop: start=0, step=1, limit=1
              $region93: #{tpu_custom_call.1} parent=91 // loop_pre_header
                _
              $region94: #{tpu_custom_call.1} parent=91 // loop_header
                %s461 = sphi 0, %s465
                %p462 = scmp.ge.s32.totalorder %s461, 1
                %s466 = sphi %s451, %s451
                %s467 = sphi %s444, %s444
              $region95: #{tpu_custom_call.1} parent=91 // loop_header_branch
                %464 = sbr.rel (%p462) target = $region99
              $region96: #{tpu_custom_call.1} parent=91 // loop_body
                %v468 = vld [vmem:[%s466] sm:%s459]
                %469 = vst [vmem:[%s467] sm:%s459] %v468
                %v470 = vld [vmem:[%s466 + $0x8] sm:%s459]
                %471 = vst [vmem:[%s467 + $0x8] sm:%s459] %v470
                %v472 = vld [vmem:[%s466 + $0x90] sm:%s459]
                %473 = vst [vmem:[%s467 + $0x10] sm:%s459] %v472
                %v474 = vld [vmem:[%s466 + $0x98] sm:%s459]
                %475 = vst [vmem:[%s467 + $0x18] sm:%s459] %v474
              $region97: #{tpu_custom_call.1} parent=91 // loop_footer
                %s465 = sadd.s32 1, %s461
              $region98: #{tpu_custom_call.1} parent=91 // loop_footer_branch
                %460 = sbr.rel target = $region94
              $region99: #{tpu_custom_call.1} parent=91 // loop_exit
                _
            $region92: #{tpu_custom_call.1} parent=83 // pred_fallthru
              _
          $region84: #{tpu_custom_call.1} parent=79 // pred_fallthru
            _
          %496 = vnop
        $region80: #{tpu_custom_call.1} parent=23 // pred_fallthru
          _
      $region24: #{tpu_custom_call.1} parent=5 // pred_fallthru
        _
      %p497 = scmp.le.s32.totalorder 1, %s13
      %p498 = scmp.lt.s32.totalorder %s13, 5
      %p499 = pnand %p497, %p498
      %p500 = pneg %p499
      // Predicated region
      $region115: #{tpu_custom_call.1} parent=5 // pred_check
        _
      $region116: #{tpu_custom_call.1} parent=5 // pred_check_branch
        %502 = sbr.rel (%p499) target = $region118
      $region117: #{tpu_custom_call.1} parent=5 // pred_region
        %s503 = ssub.s32 %s13, 1
        %s504 = sand.u32 %s40, 1
        %s505 = sand.u32 %s40, 1
        %s506 = smul.addr %s505, 256
        %s507 = scalar_lea.vmem [#allocation2], %s506
        // Predicated region
        $region119: #{tpu_custom_call.1} parent=117 // pred_check
          %p508 = pneg %p53
        $region120: #{tpu_custom_call.1} parent=117 // pred_check_branch
          %510 = sbr.rel (%p508) target = $region122
        $region121: #{tpu_custom_call.1} parent=117 // pred_region
          _
        $region122: #{tpu_custom_call.1} parent=117 // pred_fallthru
          _
        %s511 = sand.u32 %s72, 1
        %s512 = sand.u32 %s72, 1
        %s513 = smul.addr %s512, 32
        %s514 = scalar_lea.vmem [#allocation3], %s513
        // Predicated region
        $region123: #{tpu_custom_call.1} parent=117 // pred_check
          %p515 = pneg %p85
        $region124: #{tpu_custom_call.1} parent=117 // pred_check_branch
          %517 = sbr.rel (%p515) target = $region126
        $region125: #{tpu_custom_call.1} parent=117 // pred_region
          _
        $region126: #{tpu_custom_call.1} parent=117 // pred_fallthru
          _
        %s518 = sand.u32 %s40, 1
        %s519 = sand.u32 %s40, 1
        %s520 = smul.addr %s519, 256
        %s521 = scalar_lea.vmem [#allocation2], %s520
        %p522 = pneg %p53
        %p523 = pneg %p50
        %s524 = sand.u32 %s72, 1
        %s525 = sand.u32 %s72, 1
        %s526 = smul.addr %s525, 32
        %s527 = scalar_lea.vmem [#allocation3], %s526
        %p528 = pneg %p85
        %p529 = pneg %p82
        %p530 = pneg %p106
        %p531 = pneg %p103
        %p532 = pneg %p127
        %p533 = pneg %p124
        %p534 = pneg %p155
        %p535 = pneg %p152
        %s536 = sand.u32 %s142, 1
        %s537 = scalar_lea.sflag [#allocation5], %s536
        %s538 = sand.u32 %s142, 1
        %s539 = smul.addr %s538, 32
        %s540 = scalar_lea.vmem [#allocation4], %s539
        %s541 = smul.u32 4, %s23
        %s542 = ssub.s32 9, %s541
        %p543 = scmp.lt.s32.totalorder %s542, 4
        %s544 = scalar_select %p543, %s542, 4
        %s545 = smul.u32 32, %s544
        %s546 = smul.u32 %s545, 2
        %s547 = sadd.s32 %s23, 1
        %s548 = smul.u32 %s547, 4
        %s549 = smul.u32 4, %s23
        %v550 = vld [vmem:[%s507] sm:$0xff]
        %v551 = vld [vmem:[%s507 + $0x8] sm:$0x1]
        %v552 = vld [vmem:[%s507 + $0x10] sm:$0xff]
        %v553 = vld [vmem:[%s507 + $0x18] sm:$0x1]
        %v554 = vld [vmem:[%s507 + $0x20] sm:$0xff]
        %v555 = vld [vmem:[%s507 + $0x28] sm:$0x1]
        %v556 = vld [vmem:[%s507 + $0x30] sm:$0xff]
        %v557 = vld [vmem:[%s507 + $0x38] sm:$0x1]
        %v558 = vld [vmem:[%s507 + $0x40] sm:$0xff]
        %v559 = vld [vmem:[%s507 + $0x50] sm:$0xff]
        %v560 = vld [vmem:[%s507 + $0x60] sm:$0xff]
        %v561 = vld [vmem:[%s507 + $0x70] sm:$0xff]
        %v562 = vld [vmem:[%s507 + $0x80] sm:$0xff]
        %v563 = vld [vmem:[%s507 + $0x88] sm:$0x1]
        %v564 = vld [vmem:[%s507 + $0x90] sm:$0xff]
        %v565 = vld [vmem:[%s507 + $0x98] sm:$0x1]
        %v566 = vld [vmem:[%s507 + $0xa0] sm:$0xff]
        %v567 = vld [vmem:[%s507 + $0xa8] sm:$0x1]
        %v568 = vld [vmem:[%s507 + $0xb0] sm:$0xff]
        %v569 = vld [vmem:[%s507 + $0xb8] sm:$0x1]
        %v570 = vld [vmem:[%s507 + $0xc0] sm:$0xff]
        %v571 = vld [vmem:[%s507 + $0xd0] sm:$0xff]
        %v572 = vld [vmem:[%s507 + $0xe0] sm:$0xff]
        %v573 = vld [vmem:[%s507 + $0xf0] sm:$0xff]
        %v574 = vld [vmem:[%s514] sm:$0xff]
        %v575 = vld [vmem:[%s514 + $0x8] sm:$0x1]
        %v576 = vld [vmem:[%s514 + $0x10] sm:$0xff]
        %v577 = vld [vmem:[%s2] sm:$0xff]
        %v578 = vld [vmem:[%s2 + $0x8] sm:$0xf]
        %v580 = vrot.slane %v577, 4
        %vm581 = vcmask 31744
        %v583 = vsel %vm581, %v558, 0
        %v586 = vsel %vm581, %v559, 0
        %v589 = vsel %vm581, %v560, 0
        %v592 = vsel %vm581, %v561, 0
        %vm594 = vcmask 1043456
        %v595 = vsel %vm594, %v580, 0
        %597 = vmatpush.msra.mxu0 0.0
        %598 = vmatpush.msra.mxu0 0.0
        %599 = vmatpush.msra.mxu0 0.0
        %600 = vmatpush.msra.mxu0 0.0
        %601 = vmatpush.msra.mxu0 0.0
        %602 = vmatpush.msra.mxu0 0.0
        %603 = vmatpush.msra.mxu0 0.0
        %604 = vmatpush.msra.mxu0 0.0
        %605 = vmatpush.msra.mxu0 0.0
        %606 = vmatpush.msra.mxu0 0.0
        %607 = vmatpush.msra.mxu0 0.0
        %608 = vmatpush.msra.mxu0 0.0
        %609 = vmatpush.msra.mxu0 0.0
        %610 = vmatpush.msra.mxu0 0.0
        %611 = vmatpush.msra.mxu0 0.0
        %612 = vmatpush.msra.mxu0 %v595
        %613 = vmatmul.f32.gmra.mxu0 %v583
        %v614 = vpop.f32.mrf.mxu0
        %v615 = vadd.f32 0.0, %v614
        %616 = vmatmul.f32.gmra.mxu0 %v586
        %v617 = vpop.f32.mrf.mxu0
        %v618 = vadd.f32 0.0, %v617
        %619 = vmatmul.f32.gmra.mxu0 %v589
        %v620 = vpop.f32.mrf.mxu0
        %v621 = vadd.f32 0.0, %v620
        %622 = vmatmul.f32.gmra.mxu0 %v592
        %v623 = vpop.f32.mrf.mxu0
        %v624 = vadd.f32 0.0, %v623
        %625 = vdwg.mxu0
        %v627 = vsel %vm581, %v550, 0
        %v630 = vsel %vm581, %v552, 0
        %v633 = vsel %vm581, %v554, 0
        %v636 = vsel %vm581, %v556, 0
        %v638 = vsel %vm594, %v577, 0
        %640 = vmatpush.msra.mxu0 0.0
        %641 = vmatpush.msra.mxu0 0.0
        %642 = vmatpush.msra.mxu0 0.0
        %643 = vmatpush.msra.mxu0 0.0
        %644 = vmatpush.msra.mxu0 0.0
        %645 = vmatpush.msra.mxu0 0.0
        %646 = vmatpush.msra.mxu0 0.0
        %647 = vmatpush.msra.mxu0 0.0
        %648 = vmatpush.msra.mxu0 0.0
        %649 = vmatpush.msra.mxu0 0.0
        %650 = vmatpush.msra.mxu0 0.0
        %651 = vmatpush.msra.mxu0 0.0
        %652 = vmatpush.msra.mxu0 0.0
        %653 = vmatpush.msra.mxu0 0.0
        %654 = vmatpush.msra.mxu0 0.0
        %655 = vmatpush.msra.mxu0 %v638
        %656 = vmatmul.f32.gmra.mxu0 %v627
        %v657 = vpop.f32.mrf.mxu0
        %v658 = vadd.f32 %v615, %v657
        %659 = vmatmul.f32.gmra.mxu0 %v630
        %v660 = vpop.f32.mrf.mxu0
        %v661 = vadd.f32 %v618, %v660
        %662 = vmatmul.f32.gmra.mxu0 %v633
        %v663 = vpop.f32.mrf.mxu0
        %v664 = vadd.f32 %v621, %v663
        %665 = vmatmul.f32.gmra.mxu0 %v636
        %v666 = vpop.f32.mrf.mxu0
        %v667 = vadd.f32 %v624, %v666
        %668 = vdwg.mxu0
        %vm673 = vcmask 1046528
        %v674 = vrot.slane %v550, 1
        %v675 = vrot.slane %v551, 1
        %v676 = vsel %vm673, %v674, %v675
        %v677 = vrot.slane %v552, 1
        %v678 = vrot.slane %v553, 1
        %v679 = vsel %vm673, %v677, %v678
        %v680 = vrot.slane %v554, 1
        %v681 = vrot.slane %v555, 1
        %v682 = vsel %vm673, %v680, %v681
        %v683 = vrot.slane %v556, 1
        %v684 = vrot.slane %v557, 1
        %v685 = vsel %vm673, %v683, %v684
        %v686 = vsel %vm581, %v676, 0
        %v688 = vsel %vm581, %v679, 0
        %v690 = vsel %vm581, %v682, 0
        %v692 = vsel %vm581, %v685, 0
        %v695 = vsel %vm594, %v578, 0
        %697 = vmatpush.msra.mxu0 0.0
        %698 = vmatpush.msra.mxu0 0.0
        %699 = vmatpush.msra.mxu0 0.0
        %700 = vmatpush.msra.mxu0 0.0
        %701 = vmatpush.msra.mxu0 0.0
        %702 = vmatpush.msra.mxu0 0.0
        %703 = vmatpush.msra.mxu0 0.0
        %704 = vmatpush.msra.mxu0 0.0
        %705 = vmatpush.msra.mxu0 0.0
        %706 = vmatpush.msra.mxu0 0.0
        %707 = vmatpush.msra.mxu0 0.0
        %708 = vmatpush.msra.mxu0 0.0
        %709 = vmatpush.msra.mxu0 0.0
        %710 = vmatpush.msra.mxu0 0.0
        %711 = vmatpush.msra.mxu0 0.0
        %712 = vmatpush.msra.mxu0 %v695
        %713 = vmatmul.f32.gmra.mxu0 %v686
        %v714 = vpop.f32.mrf.mxu0
        %v715 = vadd.f32 0.0, %v714
        %716 = vmatmul.f32.gmra.mxu0 %v688
        %v717 = vpop.f32.mrf.mxu0
        %v718 = vadd.f32 0.0, %v717
        %719 = vmatmul.f32.gmra.mxu0 %v690
        %v720 = vpop.f32.mrf.mxu0
        %v721 = vadd.f32 0.0, %v720
        %722 = vmatmul.f32.gmra.mxu0 %v692
        %v723 = vpop.f32.mrf.mxu0
        %v724 = vadd.f32 0.0, %v723
        %725 = vdwg.mxu0
        %v726 = vadd.f32 %v658, %v715
        %v727 = vadd.f32 %v661, %v718
        %v728 = vadd.f32 %v664, %v721
        %v729 = vadd.f32 %v667, %v724
        %s730 = scalar_lea.vmem %s2, 16
        %v731 = vld [vmem:[%s730] sm:$0xff]
        %v732 = vld [vmem:[%s730 + $0x8] sm:$0xf]
        %v734 = vsel %vm581, %v562, 0
        %v737 = vsel %vm581, %v564, 0
        %v740 = vsel %vm581, %v566, 0
        %v743 = vsel %vm581, %v568, 0
        %v746 = vsel %vm594, %v731, 0
        %748 = vmatpush.msra.mxu0 0.0
        %749 = vmatpush.msra.mxu0 0.0
        %750 = vmatpush.msra.mxu0 0.0
        %751 = vmatpush.msra.mxu0 0.0
        %752 = vmatpush.msra.mxu0 0.0
        %753 = vmatpush.msra.mxu0 0.0
        %754 = vmatpush.msra.mxu0 0.0
        %755 = vmatpush.msra.mxu0 0.0
        %756 = vmatpush.msra.mxu0 0.0
        %757 = vmatpush.msra.mxu0 0.0
        %758 = vmatpush.msra.mxu0 0.0
        %759 = vmatpush.msra.mxu0 0.0
        %760 = vmatpush.msra.mxu0 0.0
        %761 = vmatpush.msra.mxu0 0.0
        %762 = vmatpush.msra.mxu0 0.0
        %763 = vmatpush.msra.mxu0 %v746
        %764 = vmatmul.f32.gmra.mxu0 %v734
        %v765 = vpop.f32.mrf.mxu0
        %v766 = vadd.f32 0.0, %v765
        %767 = vmatmul.f32.gmra.mxu0 %v737
        %v768 = vpop.f32.mrf.mxu0
        %v769 = vadd.f32 0.0, %v768
        %770 = vmatmul.f32.gmra.mxu0 %v740
        %v771 = vpop.f32.mrf.mxu0
        %v772 = vadd.f32 0.0, %v771
        %773 = vmatmul.f32.gmra.mxu0 %v743
        %v774 = vpop.f32.mrf.mxu0
        %v775 = vadd.f32 0.0, %v774
        %776 = vdwg.mxu0
        %v777 = vadd.f32 %v726, %v766
        %v778 = vadd.f32 %v727, %v769
        %v779 = vadd.f32 %v728, %v772
        %v780 = vadd.f32 %v729, %v775
        %v781 = vrot.slane %v731, 4
        %v783 = vsel %vm581, %v570, 0
        %v786 = vsel %vm581, %v571, 0
        %v789 = vsel %vm581, %v572, 0
        %v792 = vsel %vm581, %v573, 0
        %v794 = vsel %vm594, %v781, 0
        %796 = vmatpush.msra.mxu0 0.0
        %797 = vmatpush.msra.mxu0 0.0
        %798 = vmatpush.msra.mxu0 0.0
        %799 = vmatpush.msra.mxu0 0.0
        %800 = vmatpush.msra.mxu0 0.0
        %801 = vmatpush.msra.mxu0 0.0
        %802 = vmatpush.msra.mxu0 0.0
        %803 = vmatpush.msra.mxu0 0.0
        %804 = vmatpush.msra.mxu0 0.0
        %805 = vmatpush.msra.mxu0 0.0
        %806 = vmatpush.msra.mxu0 0.0
        %807 = vmatpush.msra.mxu0 0.0
        %808 = vmatpush.msra.mxu0 0.0
        %809 = vmatpush.msra.mxu0 0.0
        %810 = vmatpush.msra.mxu0 0.0
        %811 = vmatpush.msra.mxu0 %v794
        %812 = vmatmul.f32.gmra.mxu0 %v783
        %v813 = vpop.f32.mrf.mxu0
        %v814 = vadd.f32 0.0, %v813
        %815 = vmatmul.f32.gmra.mxu0 %v786
        %v816 = vpop.f32.mrf.mxu0
        %v817 = vadd.f32 0.0, %v816
        %818 = vmatmul.f32.gmra.mxu0 %v789
        %v819 = vpop.f32.mrf.mxu0
        %v820 = vadd.f32 0.0, %v819
        %821 = vmatmul.f32.gmra.mxu0 %v792
        %v822 = vpop.f32.mrf.mxu0
        %v823 = vadd.f32 0.0, %v822
        %824 = vdwg.mxu0
        %v825 = vadd.f32 %v777, %v814
        %v826 = vadd.f32 %v778, %v817
        %v827 = vadd.f32 %v779, %v820
        %v828 = vadd.f32 %v780, %v823
        %v833 = vrot.slane %v562, 1
        %v834 = vrot.slane %v563, 1
        %v835 = vsel %vm673, %v833, %v834
        %v836 = vrot.slane %v564, 1
        %v837 = vrot.slane %v565, 1
        %v838 = vsel %vm673, %v836, %v837
        %v839 = vrot.slane %v566, 1
        %v840 = vrot.slane %v567, 1
        %v841 = vsel %vm673, %v839, %v840
        %v842 = vrot.slane %v568, 1
        %v843 = vrot.slane %v569, 1
        %v844 = vsel %vm673, %v842, %v843
        %v845 = vsel %vm581, %v835, 0
        %v847 = vsel %vm581, %v838, 0
        %v849 = vsel %vm581, %v841, 0
        %v851 = vsel %vm581, %v844, 0
        %v854 = vsel %vm594, %v732, 0
        %856 = vmatpush.msra.mxu0 0.0
        %857 = vmatpush.msra.mxu0 0.0
        %858 = vmatpush.msra.mxu0 0.0
        %859 = vmatpush.msra.mxu0 0.0
        %860 = vmatpush.msra.mxu0 0.0
        %861 = vmatpush.msra.mxu0 0.0
        %862 = vmatpush.msra.mxu0 0.0
        %863 = vmatpush.msra.mxu0 0.0
        %864 = vmatpush.msra.mxu0 0.0
        %865 = vmatpush.msra.mxu0 0.0
        %866 = vmatpush.msra.mxu0 0.0
        %867 = vmatpush.msra.mxu0 0.0
        %868 = vmatpush.msra.mxu0 0.0
        %869 = vmatpush.msra.mxu0 0.0
        %870 = vmatpush.msra.mxu0 0.0
        %871 = vmatpush.msra.mxu0 %v854
        %872 = vmatmul.f32.gmra.mxu0 %v845
        %v873 = vpop.f32.mrf.mxu0
        %v874 = vadd.f32 0.0, %v873
        %875 = vmatmul.f32.gmra.mxu0 %v847
        %v876 = vpop.f32.mrf.mxu0
        %v877 = vadd.f32 0.0, %v876
        %878 = vmatmul.f32.gmra.mxu0 %v849
        %v879 = vpop.f32.mrf.mxu0
        %v880 = vadd.f32 0.0, %v879
        %881 = vmatmul.f32.gmra.mxu0 %v851
        %v882 = vpop.f32.mrf.mxu0
        %v883 = vadd.f32 0.0, %v882
        %884 = vdwg.mxu0
        %v885 = vadd.f32 %v825, %v874
        %v886 = vadd.f32 %v826, %v877
        %v887 = vadd.f32 %v827, %v880
        %v888 = vadd.f32 %v828, %v883
        %s889 = scalar_lea.vmem %s2, 32
        %v890 = vld [vmem:[%s889] sm:$0xff]
        %v891 = vld [vmem:[%s889 + $0x8] sm:$0xf]
        %v893 = vsel %vm581, %v574, 0
        %v896 = vsel %vm594, %v890, 0
        %898 = vmatpush.msra.mxu0 0.0
        %899 = vmatpush.msra.mxu0 0.0
        %900 = vmatpush.msra.mxu0 0.0
        %901 = vmatpush.msra.mxu0 0.0
        %902 = vmatpush.msra.mxu0 0.0
        %903 = vmatpush.msra.mxu0 0.0
        %904 = vmatpush.msra.mxu0 0.0
        %905 = vmatpush.msra.mxu0 0.0
        %906 = vmatpush.msra.mxu0 0.0
        %907 = vmatpush.msra.mxu0 0.0
        %908 = vmatpush.msra.mxu0 0.0
        %909 = vmatpush.msra.mxu0 0.0
        %910 = vmatpush.msra.mxu0 0.0
        %911 = vmatpush.msra.mxu0 0.0
        %912 = vmatpush.msra.mxu0 0.0
        %913 = vmatpush.msra.mxu0 %v896
        %914 = vmatmul.f32.gmra.mxu0 %v630
        %v915 = vpop.f32.mrf.mxu0
        %v916 = vadd.f32 0.0, %v915
        %917 = vmatmul.f32.gmra.mxu0 %v633
        %v918 = vpop.f32.mrf.mxu0
        %v919 = vadd.f32 0.0, %v918
        %920 = vmatmul.f32.gmra.mxu0 %v636
        %v921 = vpop.f32.mrf.mxu0
        %v922 = vadd.f32 0.0, %v921
        %923 = vmatmul.f32.gmra.mxu0 %v893
        %v924 = vpop.f32.mrf.mxu0
        %v925 = vadd.f32 0.0, %v924
        %926 = vdwg.mxu0
        %v927 = vadd.f32 %v885, %v916
        %v928 = vadd.f32 %v886, %v919
        %v929 = vadd.f32 %v887, %v922
        %v930 = vadd.f32 %v888, %v925
        %v931 = vrot.slane %v890, 4
        %v933 = vsel %vm581, %v576, 0
        %v935 = vsel %vm594, %v931, 0
        %937 = vmatpush.msra.mxu0 0.0
        %938 = vmatpush.msra.mxu0 0.0
        %939 = vmatpush.msra.mxu0 0.0
        %940 = vmatpush.msra.mxu0 0.0
        %941 = vmatpush.msra.mxu0 0.0
        %942 = vmatpush.msra.mxu0 0.0
        %943 = vmatpush.msra.mxu0 0.0
        %944 = vmatpush.msra.mxu0 0.0
        %945 = vmatpush.msra.mxu0 0.0
        %946 = vmatpush.msra.mxu0 0.0
        %947 = vmatpush.msra.mxu0 0.0
        %948 = vmatpush.msra.mxu0 0.0
        %949 = vmatpush.msra.mxu0 0.0
        %950 = vmatpush.msra.mxu0 0.0
        %951 = vmatpush.msra.mxu0 0.0
        %952 = vmatpush.msra.mxu0 %v935
        %953 = vmatmul.f32.gmra.mxu0 %v586
        %v954 = vpop.f32.mrf.mxu0
        %v955 = vadd.f32 0.0, %v954
        %956 = vmatmul.f32.gmra.mxu0 %v589
        %v957 = vpop.f32.mrf.mxu0
        %v958 = vadd.f32 0.0, %v957
        %959 = vmatmul.f32.gmra.mxu0 %v592
        %v960 = vpop.f32.mrf.mxu0
        %v961 = vadd.f32 0.0, %v960
        %962 = vmatmul.f32.gmra.mxu0 %v933
        %v963 = vpop.f32.mrf.mxu0
        %v964 = vadd.f32 0.0, %v963
        %965 = vdwg.mxu0
        %v966 = vadd.f32 %v927, %v955
        %v967 = vadd.f32 %v928, %v958
        %v968 = vadd.f32 %v929, %v961
        %v969 = vadd.f32 %v930, %v964
        %v971 = vrot.slane %v574, 1
        %v972 = vrot.slane %v575, 1
        %v973 = vsel %vm673, %v971, %v972
        %v974 = vsel %vm581, %v973, 0
        %v977 = vsel %vm594, %v891, 0
        %979 = vmatpush.msra.mxu0 0.0
        %980 = vmatpush.msra.mxu0 0.0
        %981 = vmatpush.msra.mxu0 0.0
        %982 = vmatpush.msra.mxu0 0.0
        %983 = vmatpush.msra.mxu0 0.0
        %984 = vmatpush.msra.mxu0 0.0
        %985 = vmatpush.msra.mxu0 0.0
        %986 = vmatpush.msra.mxu0 0.0
        %987 = vmatpush.msra.mxu0 0.0
        %988 = vmatpush.msra.mxu0 0.0
        %989 = vmatpush.msra.mxu0 0.0
        %990 = vmatpush.msra.mxu0 0.0
        %991 = vmatpush.msra.mxu0 0.0
        %992 = vmatpush.msra.mxu0 0.0
        %993 = vmatpush.msra.mxu0 0.0
        %994 = vmatpush.msra.mxu0 %v977
        %995 = vmatmul.f32.gmra.mxu0 %v688
        %v996 = vpop.f32.mrf.mxu0
        %v997 = vadd.f32 0.0, %v996
        %998 = vmatmul.f32.gmra.mxu0 %v690
        %v999 = vpop.f32.mrf.mxu0
        %v1000 = vadd.f32 0.0, %v999
        %1001 = vmatmul.f32.gmra.mxu0 %v692
        %v1002 = vpop.f32.mrf.mxu0
        %v1003 = vadd.f32 0.0, %v1002
        %1004 = vmatmul.f32.gmra.mxu0 %v974
        %v1005 = vpop.f32.mrf.mxu0
        %v1006 = vadd.f32 0.0, %v1005
        %1007 = vdwg.mxu0
        %v1008 = vadd.f32 %v966, %v997
        %v1009 = vadd.f32 %v967, %v1000
        %v1010 = vadd.f32 %v968, %v1003
        %v1011 = vadd.f32 %v969, %v1006
        %v1012 = vld [vmem:[%s3] sm:$0x1]
        %v1014 = vperm.slane %v1012, 0
        %v1016 = vadd.f32 %v1008, %v1014
        %v1017 = vadd.f32 %v1009, %v1014
        %v1018 = vadd.f32 %v1010, %v1014
        %v1019 = vadd.f32 %v1011, %v1014
        %1020 = vst [vmem:[%s540] sm:$0xff] %v1016
        %1021 = vst [vmem:[%s540 + $0x8] sm:$0xff] %v1017
        %1022 = vst [vmem:[%s540 + $0x10] sm:$0xff] %v1018
        %1023 = vst [vmem:[%s540 + $0x18] sm:$0xff] %v1019
        %s1024 = sand.u32 %s142, 1
        %s1025 = scalar_lea.sflag [#allocation5], %s1024
        %s1026 = sand.u32 %s142, 1
        %s1027 = smul.addr %s1026, 32
        %s1028 = scalar_lea.vmem [#allocation4], %s1027
        // Predicated region
        $region127: #{tpu_custom_call.1} parent=117 // pred_check
          %p1029 = pneg %p152
        $region128: #{tpu_custom_call.1} parent=117 // pred_check_branch
          %1031 = sbr.rel (%p1029) target = $region130
        $region129: #{tpu_custom_call.1} parent=117 // pred_region
          %s1032 = smul.u32 4, %s23
          %1034 = vsyncadd %s1025, 0
          %s1035 = smul.addr %s22, 8
          %s1036 = sadd.s32 %s1032, %s1035
          %s1037 = smul.addr %s1036, 8
          %s1038 = scalar_lea.hbm %s4, %s1037
          %s1039 = sshll.u32 %s1028, 4
          %s1040 = int_to_ptr.vmem [resolvable:$true] %s1039
          %s1041 = sshll.u32 %s1038, 4
          %s1042 = int_to_ptr.hbm [resolvable:$true] %s1041
          %1047 = dma.vmem_to_hbm [thread:$0]  %s1040, 512, %s1042, %s1025, 128, 128, 8
        $region130: #{tpu_custom_call.1} parent=117 // pred_fallthru
          _
      $region118: #{tpu_custom_call.1} parent=5 // pred_fallthru
        _
      %p1048 = scmp.le.s32.totalorder 2, %s13
      // Predicated region
      $region131: #{tpu_custom_call.1} parent=5 // pred_check
        %p1049 = pneg %p1048
      $region132: #{tpu_custom_call.1} parent=5 // pred_check_branch
        %1051 = sbr.rel (%p1049) target = $region134
      $region133: #{tpu_custom_call.1} parent=5 // pred_region
        %s1052 = ssub.s32 %s13, 2
        // Predicated region
        $region135: #{tpu_custom_call.1} parent=133 // pred_check
          %p1053 = pneg %p158
        $region136: #{tpu_custom_call.1} parent=133 // pred_check_branch
          %1055 = sbr.rel (%p1053) target = $region138
        $region137: #{tpu_custom_call.1} parent=133 // pred_region
          %s1056 = sand.u32 %s143, 1
          %s1057 = scalar_lea.sflag [#allocation5], %s1056
          %s1058 = sand.u32 %s143, 1
          %s1059 = smul.addr %s1058, 32
          %s1060 = scalar_lea.vmem [#allocation4], %s1059
          %1062 = dma.done %s1057, 512
        $region138: #{tpu_custom_call.1} parent=133 // pred_fallthru
          _
      $region134: #{tpu_custom_call.1} parent=5 // pred_fallthru
        _
    $region6: #{tpu_custom_call.1} parent=1 // loop_footer
      %s17 = sadd.s32 1, %s13
    $region7: #{tpu_custom_call.1} parent=1 // loop_footer_branch
      %12 = sbr.rel target = $region3
    $region8: #{tpu_custom_call.1} parent=1 // loop_exit
      _
    %1063 = vsyncpa [#allocation5], 1
    %s1064 = scalar_lea.sflag [#allocation5], 1
    %1065 = vsyncpa %s1064, 1

// kernel: tpu_custom_call.1
$region0: #{tpu_custom_call.1}
  #allocation0 [shape = 'u32[]', space=smem, size = 0x4, offset = 0x4, fixed_abs, tag = 'smem constant byte address 0x4 - core index']
  #allocation1 [shape = 'u32[72,128]{1,0:T(1,128)}', space=vmem, size = 0x9000, scoped, tag = 'internal scratch']
  %s0 = inlined_call_operand.vmem [shape: f32[2,2,2,9,9,4], index: 0, kind: input, shape index: {}]
  %s1 = inlined_call_operand.vmem [shape: f32[2,2,2,9,9,4], index: 1, kind: input, shape index: {}]
  %s2 = inlined_call_operand.vmem [shape: f32[3,12,128], index: 2, kind: input, shape index: {}]
  %s3 = inlined_call_operand.vmem [shape: f32[1,128], index: 3, kind: input, shape index: {}]
  %s4 = inlined_call_operand.hbm [shape: f32[2,64,128], index: 4, kind: output, shape index: {}]
  %s5 = sld [smem:[#allocation0]]
  $region139: #{tpu_custom_call.1} parent=0
    _
  %s7 = ssub.s32 1, %s5
  %s8 = scalar_select 0, %s7, %s5
  $region1: #{tpu_custom_call.1} parent=0
    #allocation2 [shape = 'u8[262144]{0}', space=vmem, size = 0x40000, scoped, tag = 'input window, operand 0']
    #allocation3 [shape = 'u8[32768]{0}', space=vmem, size = 0x8000, scoped, tag = 'input window, operand 1']
    #allocation4 [shape = 'u8[32768]{0}', space=vmem, size = 0x8000, scoped, tag = 'output window, operand 0']
    #allocation5 [shape = 's32[2]{0}', space=sflag, size = 0x8, scoped, tag = 'scoped memory for tpu_custom_call.1']
    %9 = vsyncpa [#allocation5], 0
    %s10 = scalar_lea.sflag [#allocation5], 1
    %11 = vsyncpa %s10, 0
    loop: start=0, step=1, limit=6
    $region2: #{tpu_custom_call.1} parent=1 // loop_pre_header
      _
    $region3: #{tpu_custom_call.1} parent=1 // loop_header
      %s13 = sphi 0, %s17
      %p14 = scmp.ge.s32.totalorder %s13, 6
      %s20 = sphi 0, %s32
      %s21 = sphi 0, %s28
      %s22 = sphi 0, %s20
      %s23 = sphi 0, %s21
      %s24 = sphi 0, %s22
      %s25 = sphi 0, %s23
      %s37 = sphi 0, %s39
      %s40 = sphi 0, %s37
      %s41 = sphi 0, %s40
      %s57 = sphi 0, %s41
      %s69 = sphi 0, %s71
      %s72 = sphi 0, %s69
      %s73 = sphi 0, %s72
      %s89 = sphi 0, %s73
      %s93 = sphi 0, %s93
      %s95 = sphi 0, %s93
      %s96 = sphi 0, %s95
      %s110 = sphi 0, %s96
      %s114 = sphi 0, %s114
      %s116 = sphi 0, %s114
      %s117 = sphi 0, %s116
      %s131 = sphi 0, %s117
      %s139 = sphi 0, %s141
      %s142 = sphi 0, %s139
      %s143 = sphi 0, %s142
      %s159 = sphi 0, %s143
    $region4: #{tpu_custom_call.1} parent=1 // loop_header_branch
      %16 = sbr.rel (%p14) target = $region8
    $region5: #{tpu_custom_call.1} parent=1 // loop_body
      %s18 = ssub.s32 %s13, 1
      %s19 = ssub.s32 %s13, 2
      %s26 = sadd.s32 1, %s21
      %p27 = scmp.ge.s32.totalorder %s26, 2
      %s28 = scalar_select %p27, 0, %s26
      %s29 = sadd.s32 1, %s20
      %s30 = scalar_select %p27, %s29, %s20
      %p31 = scmp.ge.s32.totalorder %s30, 2
      %s32 = scalar_select %p31, 0, %s30
      %s33 = ssub.s32 %s20, %s32
      %s34 = ssub.s32 %s21, %s28
      %s35 = sor.u32 %s33, %s34
      %p36 = scmp.eq.s32.totalorder %s35, 0
      %s38 = sadd.s32 %s37, 1
      %s39 = scalar_select %p36, %s37, %s38
      %p42 = pneg %p36
      %p43 = scmp.eq.s32.totalorder %s13, 3
      %p44 = por %p42, %p43
      %p45 = scmp.ne.s32.totalorder %s37, %s40
      %p46 = scmp.eq.s32.totalorder %s13, 0
      %p47 = por %p45, %p46
      %p48 = scmp.ne.s32.totalorder %s37, %s40
      %p49 = scmp.eq.s32.totalorder %s18, 3
      %p50 = por %p48, %p49
      %p51 = scmp.ne.s32.totalorder %s40, %s41
      %p52 = scmp.eq.s32.totalorder %s18, 0
      %p53 = por %p51, %p52
      %p54 = scmp.ne.s32.totalorder %s40, %s41
      %p55 = scmp.eq.s32.totalorder %s19, 3
      %p56 = por %p54, %p55
      %p58 = scmp.ne.s32.totalorder %s41, %s57
      %p59 = scmp.eq.s32.totalorder %s19, 0
      %p60 = por %p58, %p59
      %s61 = sadd.s32 %s21, 1
      %s62 = smul.u32 %s61, 4
      %s63 = sadd.s32 %s28, 1
      %s64 = smul.u32 %s63, 4
      %s65 = ssub.s32 %s20, %s32
      %s66 = ssub.s32 %s62, %s64
      %s67 = sor.u32 %s65, %s66
      %p68 = scmp.eq.s32.totalorder %s67, 0
      %s70 = sadd.s32 %s69, 1
      %s71 = scalar_select %p68, %s69, %s70
      %p74 = pneg %p68
      %p75 = scmp.eq.s32.totalorder %s13, 3
      %p76 = por %p74, %p75
      %p77 = scmp.ne.s32.totalorder %s69, %s72
      %p78 = scmp.eq.s32.totalorder %s13, 0
      %p79 = por %p77, %p78
      %p80 = scmp.ne.s32.totalorder %s69, %s72
      %p81 = scmp.eq.s32.totalorder %s18, 3
      %p82 = por %p80, %p81
      %p83 = scmp.ne.s32.totalorder %s72, %s73
      %p84 = scmp.eq.s32.totalorder %s18, 0
      %p85 = por %p83, %p84
      %p86 = scmp.ne.s32.totalorder %s72, %s73
      %p87 = scmp.eq.s32.totalorder %s19, 3
      %p88 = por %p86, %p87
      %p90 = scmp.ne.s32.totalorder %s73, %s89
      %p91 = scmp.eq.s32.totalorder %s19, 0
      %p92 = por %p90, %p91
      %s94 = sadd.s32 %s93, 1
      %p97 = scmp.eq.s32.totalorder %s13, 3
      %p98 = scmp.ne.s32.totalorder %s93, %s95
      %p99 = scmp.eq.s32.totalorder %s13, 0
      %p100 = por %p98, %p99
      %p101 = scmp.ne.s32.totalorder %s93, %s95
      %p102 = scmp.eq.s32.totalorder %s18, 3
      %p103 = por %p101, %p102
      %p104 = scmp.ne.s32.totalorder %s95, %s96
      %p105 = scmp.eq.s32.totalorder %s18, 0
      %p106 = por %p104, %p105
      %p107 = scmp.ne.s32.totalorder %s95, %s96
      %p108 = scmp.eq.s32.totalorder %s19, 3
      %p109 = por %p107, %p108
      %p111 = scmp.ne.s32.totalorder %s96, %s110
      %p112 = scmp.eq.s32.totalorder %s19, 0
      %p113 = por %p111, %p112
      %s115 = sadd.s32 %s114, 1
      %p118 = scmp.eq.s32.totalorder %s13, 3
      %p119 = scmp.ne.s32.totalorder %s114, %s116
      %p120 = scmp.eq.s32.totalorder %s13, 0
      %p121 = por %p119, %p120
      %p122 = scmp.ne.s32.totalorder %s114, %s116
      %p123 = scmp.eq.s32.totalorder %s18, 3
      %p124 = por %p122, %p123
      %p125 = scmp.ne.s32.totalorder %s116, %s117
      %p126 = scmp.eq.s32.totalorder %s18, 0
      %p127 = por %p125, %p126
      %p128 = scmp.ne.s32.totalorder %s116, %s117
      %p129 = scmp.eq.s32.totalorder %s19, 3
      %p130 = por %p128, %p129
      %p132 = scmp.ne.s32.totalorder %s117, %s131
      %p133 = scmp.eq.s32.totalorder %s19, 0
      %p134 = por %p132, %p133
      %s135 = ssub.s32 %s20, %s32
      %s136 = ssub.s32 %s21, %s28
      %s137 = sor.u32 %s135, %s136
      %p138 = scmp.eq.s32.totalorder %s137, 0
      %s140 = sadd.s32 %s139, 1
      %s141 = scalar_select %p138, %s139, %s140
      %p144 = pneg %p138
      %p145 = scmp.eq.s32.totalorder %s13, 3
      %p146 = por %p144, %p145
      %p147 = scmp.ne.s32.totalorder %s139, %s142
      %p148 = scmp.eq.s32.totalorder %s13, 0
      %p149 = por %p147, %p148
      %p150 = scmp.ne.s32.totalorder %s139, %s142
      %p151 = scmp.eq.s32.totalorder %s18, 3
      %p152 = por %p150, %p151
      %p153 = scmp.ne.s32.totalorder %s142, %s143
      %p154 = scmp.eq.s32.totalorder %s18, 0
      %p155 = por %p153, %p154
      %p156 = scmp.ne.s32.totalorder %s142, %s143
      %p157 = scmp.eq.s32.totalorder %s19, 3
      %p158 = por %p156, %p157
      %p160 = scmp.ne.s32.totalorder %s143, %s159
      %p161 = scmp.eq.s32.totalorder %s19, 0
      %p162 = por %p160, %p161
      %p163 = scmp.le.s32.totalorder 1, %s13
      %p164 = scmp.lt.s32.totalorder %s13, 5
      %p165 = pnand %p163, %p164
      %p166 = pneg %p165
      // Predicated region
      $region9: #{tpu_custom_call.1} parent=5 // pred_check
        _
      $region10: #{tpu_custom_call.1} parent=5 // pred_check_branch
        %168 = sbr.rel (%p165) target = $region12
      $region11: #{tpu_custom_call.1} parent=5 // pred_region
        %s169 = ssub.s32 %s13, 1
        // Predicated region
        $region13: #{tpu_custom_call.1} parent=11 // pred_check
          %p170 = pneg %p106
        $region14: #{tpu_custom_call.1} parent=11 // pred_check_branch
          %172 = sbr.rel (%p170) target = $region16
        $region15: #{tpu_custom_call.1} parent=11 // pred_region
          _
        $region16: #{tpu_custom_call.1} parent=11 // pred_fallthru
          _
        // Predicated region
        $region17: #{tpu_custom_call.1} parent=11 // pred_check
          %p173 = pneg %p127
        $region18: #{tpu_custom_call.1} parent=11 // pred_check_branch
          %175 = sbr.rel (%p173) target = $region20
        $region19: #{tpu_custom_call.1} parent=11 // pred_region
          _
        $region20: #{tpu_custom_call.1} parent=11 // pred_fallthru
          _
      $region12: #{tpu_custom_call.1} parent=5 // pred_fallthru
        _
      %p176 = scmp.lt.s32.totalorder %s13, 4
      // Predicated region
      $region21: #{tpu_custom_call.1} parent=5 // pred_check
        %p177 = pneg %p176
      $region22: #{tpu_custom_call.1} parent=5 // pred_check_branch
        %179 = sbr.rel (%p177) target = $region24
      $region23: #{tpu_custom_call.1} parent=5 // pred_region
        // Predicated region
        $region25: #{tpu_custom_call.1} parent=23 // pred_check
          %p180 = pneg %p47
        $region26: #{tpu_custom_call.1} parent=23 // pred_check_branch
          %182 = sbr.rel (%p180) target = $region28
        $region27: #{tpu_custom_call.1} parent=23 // pred_region
          %s183 = sand.u32 %s37, 1
          %s184 = sand.u32 %s37, 1
          %s185 = smul.addr %s184, 256
          %s186 = scalar_lea.vmem [#allocation2], %s185
          %s187 = smul.u32 4, %s21
          %s188 = ssub.s32 9, %s187
          %p189 = scmp.lt.s32.totalorder %s188, 4
          %s190 = scalar_select %p189, %s188, 4
          %s191 = smul.u32 32, %s190
          %s192 = smul.u32 %s191, 2
          %p193 = scmp.ne.s32.totalorder 0, %s192
          %s194 = smul.addr %s187, 2
          %s195 = smul.addr %s20, 72
          %s196 = sadd.s32 %s194, %s195
          %s197 = smul.addr %s196, 8
          %s198 = scalar_lea.vmem %s0, %s197
          %s199 = smul.u32 %s190, 2
          // Predicated region
          $region29: #{tpu_custom_call.1} parent=27 // pred_check
            %p200 = pneg %p193
          $region30: #{tpu_custom_call.1} parent=27 // pred_check_branch
            %202 = sbr.rel (%p200) target = $region32
          $region31: #{tpu_custom_call.1} parent=27 // pred_region
            // Predicated region
            $region33: #{tpu_custom_call.1} parent=31 // pred_check
              _
            $region34: #{tpu_custom_call.1} parent=31 // pred_check_branch
              %204 = sbr.rel (0) target = $region36
            $region35: #{tpu_custom_call.1} parent=31 // pred_region
              // Predicated region
              $region55: #{tpu_custom_call.1} parent=35 // pred_check
                _
              $region56: #{tpu_custom_call.1} parent=35 // pred_check_branch
                %322 = sbr.rel (0) target = $region58
              $region57: #{tpu_custom_call.1} parent=35 // pred_region
                %s323 = sshrl.u32 %s199, 3
                // While loop
                $region59: #{tpu_custom_call.1} parent=57 // loop_pre_header
                  _
                $region60: #{tpu_custom_call.1} parent=57 // loop_header
                  %s325 = sphi 0, %s327
                  %p326 = scmp.ge.s32.totalorder %s325, %s323
                  %s330 = sphi 0, %s399
                  %s331 = sphi %s198, %s402
                  %s332 = sphi %s186, %s403
                $region61: #{tpu_custom_call.1} parent=57 // loop_header_branch
                  %329 = sbr.rel (%p326) target = $region65
                $region62: #{tpu_custom_call.1} parent=57 // loop_body
                  %v333 = vld [vmem:[%s331] sm:$0xff]
                  %334 = vst [vmem:[%s332] sm:$0xff] %v333
                  %v335 = vld [vmem:[%s331 + $0x8] sm:$0xff]
                  %336 = vst [vmem:[%s332 + $0x8] sm:$0xff] %v335
                  %v337 = vld [vmem:[%s331 + $0x10] sm:$0xff]
                  %338 = vst [vmem:[%s332 + $0x10] sm:$0xff] %v337
                  %v339 = vld [vmem:[%s331 + $0x18] sm:$0xff]
                  %340 = vst [vmem:[%s332 + $0x18] sm:$0xff] %v339
                  %v341 = vld [vmem:[%s331 + $0x20] sm:$0xff]
                  %342 = vst [vmem:[%s332 + $0x20] sm:$0xff] %v341
                  %v343 = vld [vmem:[%s331 + $0x28] sm:$0xff]
                  %344 = vst [vmem:[%s332 + $0x28] sm:$0xff] %v343
                  %v345 = vld [vmem:[%s331 + $0x30] sm:$0xff]
                  %346 = vst [vmem:[%s332 + $0x30] sm:$0xff] %v345
                  %v347 = vld [vmem:[%s331 + $0x38] sm:$0xff]
                  %348 = vst [vmem:[%s332 + $0x38] sm:$0xff] %v347
                  %v349 = vld [vmem:[%s331 + $0x90] sm:$0xff]
                  %350 = vst [vmem:[%s332 + $0x40] sm:$0xff] %v349
                  %v351 = vld [vmem:[%s331 + $0x98] sm:$0xff]
                  %352 = vst [vmem:[%s332 + $0x48] sm:$0xff] %v351
                  %v353 = vld [vmem:[%s331 + $0xa0] sm:$0xff]
                  %354 = vst [vmem:[%s332 + $0x50] sm:$0xff] %v353
                  %v355 = vld [vmem:[%s331 + $0xa8] sm:$0xff]
                  %356 = vst [vmem:[%s332 + $0x58] sm:$0xff] %v355
                  %v357 = vld [vmem:[%s331 + $0xb0] sm:$0xff]
                  %358 = vst [vmem:[%s332 + $0x60] sm:$0xff] %v357
                  %v359 = vld [vmem:[%s331 + $0xb8] sm:$0xff]
                  %360 = vst [vmem:[%s332 + $0x68] sm:$0xff] %v359
                  %v361 = vld [vmem:[%s331 + $0xc0] sm:$0xff]
                  %362 = vst [vmem:[%s332 + $0x70] sm:$0xff] %v361
                  %v363 = vld [vmem:[%s331 + $0xc8] sm:$0xff]
                  %364 = vst [vmem:[%s332 + $0x78] sm:$0xff] %v363
                  %v365 = vld [vmem:[%s331 + $0x120] sm:$0xff]
                  %366 = vst [vmem:[%s332 + $0x80] sm:$0xff] %v365
                  %v367 = vld [vmem:[%s331 + $0x128] sm:$0xff]
                  %368 = vst [vmem:[%s332 + $0x88] sm:$0xff] %v367
                  %v369 = vld [vmem:[%s331 + $0x130] sm:$0xff]
                  %370 = vst [vmem:[%s332 + $0x90] sm:$0xff] %v369
                  %v371 = vld [vmem:[%s331 + $0x138] sm:$0xff]
                  %372 = vst [vmem:[%s332 + $0x98] sm:$0xff] %v371
                  %v373 = vld [vmem:[%s331 + $0x140] sm:$0xff]
                  %374 = vst [vmem:[%s332 + $0xa0] sm:$0xff] %v373
                  %v375 = vld [vmem:[%s331 + $0x148] sm:$0xff]
                  %376 = vst [vmem:[%s332 + $0xa8] sm:$0xff] %v375
                  %v377 = vld [vmem:[%s331 + $0x150] sm:$0xff]
                  %378 = vst [vmem:[%s332 + $0xb0] sm:$0xff] %v377
                  %v379 = vld [vmem:[%s331 + $0x158] sm:$0xff]
                  %380 = vst [vmem:[%s332 + $0xb8] sm:$0xff] %v379
                  %v381 = vld [vmem:[%s331 + $0x1b0] sm:$0xff]
                  %382 = vst [vmem:[%s332 + $0xc0] sm:$0xff] %v381
                  %v383 = vld [vmem:[%s331 + $0x1b8] sm:$0xff]
                  %384 = vst [vmem:[%s332 + $0xc8] sm:$0xff] %v383
                  %v385 = vld [vmem:[%s331 + $0x1c0] sm:$0xff]
                  %386 = vst [vmem:[%s332 + $0xd0] sm:$0xff] %v385
                  %v387 = vld [vmem:[%s331 + $0x1c8] sm:$0xff]
                  %388 = vst [vmem:[%s332 + $0xd8] sm:$0xff] %v387
                  %v389 = vld [vmem:[%s331 + $0x1d0] sm:$0xff]
                  %390 = vst [vmem:[%s332 + $0xe0] sm:$0xff] %v389
                  %v391 = vld [vmem:[%s331 + $0x1d8] sm:$0xff]
                  %392 = vst [vmem:[%s332 + $0xe8] sm:$0xff] %v391
                  %v393 = vld [vmem:[%s331 + $0x1e0] sm:$0xff]
                  %394 = vst [vmem:[%s332 + $0xf0] sm:$0xff] %v393
                  %v395 = vld [vmem:[%s331 + $0x1e8] sm:$0xff]
                  %396 = vst [vmem:[%s332 + $0xf8] sm:$0xff] %v395
                  %s397 = sadd.s32 1, %s330
                  %p398 = scmp.ge.s32.totalorder %s397, %s323
                  %s399 = scalar_select %p398, 0, %s397
                  %s400 = smul.u32 %s399, 64
                  %s401 = smul.u32 %s399, 64
                  %s402 = scalar_lea.vmem %s198, %s400
                  %s403 = scalar_lea.vmem %s186, %s401 [#allocation2]
                $region63: #{tpu_custom_call.1} parent=57 // loop_footer
                  %s327 = sadd.s32 %s325, 1
                $region64: #{tpu_custom_call.1} parent=57 // loop_footer_branch
                  %324 = sbr.rel target = $region60
                $region65: #{tpu_custom_call.1} parent=57 // loop_exit
                  _
                %s404 = sshrl.u32 %s199, 3
                %s405 = sand.u32 %s199, 7
                %s406 = smul.u32 %s404, 8
                %s407 = smul.u32 8, %s406
                %s408 = scalar_lea.vmem %s198, %s407
                %s409 = smul.u32 8, %s406
                %s410 = scalar_lea.vmem %s186, %s409 [#allocation2]
                // While loop
                $region66: #{tpu_custom_call.1} parent=57 // loop_pre_header
                  _
                $region67: #{tpu_custom_call.1} parent=57 // loop_header
                  %s412 = sphi 0, %s414
                  %p413 = scmp.ge.s32.totalorder %s412, %s405
                  %s417 = sphi 0, %s430
                  %s418 = sphi %s408, %s433
                  %s419 = sphi %s410, %s434
                $region68: #{tpu_custom_call.1} parent=57 // loop_header_branch
                  %416 = sbr.rel (%p413) target = $region72
                $region69: #{tpu_custom_call.1} parent=57 // loop_body
                  %v420 = vld [vmem:[%s418] sm:$0xff]
                  %421 = vst [vmem:[%s419] sm:$0xff] %v420
                  %v422 = vld [vmem:[%s418 + $0x90] sm:$0xff]
                  %423 = vst [vmem:[%s419 + $0x40] sm:$0xff] %v422
                  %v424 = vld [vmem:[%s418 + $0x120] sm:$0xff]
                  %425 = vst [vmem:[%s419 + $0x80] sm:$0xff] %v424
                  %v426 = vld [vmem:[%s418 + $0x1b0] sm:$0xff]
                  %427 = vst [vmem:[%s419 + $0xc0] sm:$0xff] %v426
                  %s428 = sadd.s32 1, %s417
                  %p429 = scmp.ge.s32.totalorder %s428, %s405
                  %s430 = scalar_select %p429, 0, %s428
                  %s431 = smul.u32 %s430, 8
                  %s432 = smul.u32 %s430, 8
                  %s433 = scalar_lea.vmem %s408, %s431
                  %s434 = scalar_lea.vmem %s410, %s432 [#allocation2]
                $region70: #{tpu_custom_call.1} parent=57 // loop_footer
                  %s414 = sadd.s32 %s412, 1
                $region71: #{tpu_custom_call.1} parent=57 // loop_footer_branch
                  %411 = sbr.rel target = $region67
                $region72: #{tpu_custom_call.1} parent=57 // loop_exit
                  _
              $region58: #{tpu_custom_call.1} parent=35 // pred_fallthru
                _
              // Predicated region
              $region73: #{tpu_custom_call.1} parent=35 // pred_check
                _
              $region74: #{tpu_custom_call.1} parent=35 // pred_check_branch
                %436 = sbr.rel target = $region76
              $region75: #{tpu_custom_call.1} parent=35 // pred_region
                _
              $region76: #{tpu_custom_call.1} parent=35 // pred_fallthru
                _
            $region36: #{tpu_custom_call.1} parent=31 // pred_fallthru
              _
            // Predicated region
            $region37: #{tpu_custom_call.1} parent=31 // pred_check
              _
            $region38: #{tpu_custom_call.1} parent=31 // pred_check_branch
              %206 = sbr.rel target = $region40
            $region39: #{tpu_custom_call.1} parent=31 // pred_region
              %s208 = ssub.s32 256, 1
              %s209 = sshrl.u32 %s199, 3
              // While loop
              $region41: #{tpu_custom_call.1} parent=39 // loop_pre_header
                _
              $region42: #{tpu_custom_call.1} parent=39 // loop_header
                %s211 = sphi 0, %s213
                %p212 = scmp.ge.s32.totalorder %s211, %s209
                %s216 = sphi 0, %s285
                %s217 = sphi %s198, %s288
                %s218 = sphi %s186, %s289
              $region43: #{tpu_custom_call.1} parent=39 // loop_header_branch
                %215 = sbr.rel (%p212) target = $region47
              $region44: #{tpu_custom_call.1} parent=39 // loop_body
                %v219 = vld [vmem:[%s217] sm:%s208]
                %220 = vst [vmem:[%s218] sm:%s208] %v219
                %v221 = vld [vmem:[%s217 + $0x8] sm:%s208]
                %222 = vst [vmem:[%s218 + $0x8] sm:%s208] %v221
                %v223 = vld [vmem:[%s217 + $0x10] sm:%s208]
                %224 = vst [vmem:[%s218 + $0x10] sm:%s208] %v223
                %v225 = vld [vmem:[%s217 + $0x18] sm:%s208]
                %226 = vst [vmem:[%s218 + $0x18] sm:%s208] %v225
                %v227 = vld [vmem:[%s217 + $0x20] sm:%s208]
                %228 = vst [vmem:[%s218 + $0x20] sm:%s208] %v227
                %v229 = vld [vmem:[%s217 + $0x28] sm:%s208]
                %230 = vst [vmem:[%s218 + $0x28] sm:%s208] %v229
                %v231 = vld [vmem:[%s217 + $0x30] sm:%s208]
                %232 = vst [vmem:[%s218 + $0x30] sm:%s208] %v231
                %v233 = vld [vmem:[%s217 + $0x38] sm:%s208]
                %234 = vst [vmem:[%s218 + $0x38] sm:%s208] %v233
                %v235 = vld [vmem:[%s217 + $0x90] sm:%s208]
                %236 = vst [vmem:[%s218 + $0x40] sm:%s208] %v235
                %v237 = vld [vmem:[%s217 + $0x98] sm:%s208]
                %238 = vst [vmem:[%s218 + $0x48] sm:%s208] %v237
                %v239 = vld [vmem:[%s217 + $0xa0] sm:%s208]
                %240 = vst [vmem:[%s218 + $0x50] sm:%s208] %v239
                %v241 = vld [vmem:[%s217 + $0xa8] sm:%s208]
                %242 = vst [vmem:[%s218 + $0x58] sm:%s208] %v241
                %v243 = vld [vmem:[%s217 + $0xb0] sm:%s208]
                %244 = vst [vmem:[%s218 + $0x60] sm:%s208] %v243
                %v245 = vld [vmem:[%s217 + $0xb8] sm:%s208]
                %246 = vst [vmem:[%s218 + $0x68] sm:%s208] %v245
                %v247 = vld [vmem:[%s217 + $0xc0] sm:%s208]
                %248 = vst [vmem:[%s218 + $0x70] sm:%s208] %v247
                %v249 = vld [vmem:[%s217 + $0xc8] sm:%s208]
                %250 = vst [vmem:[%s218 + $0x78] sm:%s208] %v249
                %v251 = vld [vmem:[%s217 + $0x120] sm:%s208]
                %252 = vst [vmem:[%s218 + $0x80] sm:%s208] %v251
                %v253 = vld [vmem:[%s217 + $0x128] sm:%s208]
                %254 = vst [vmem:[%s218 + $0x88] sm:%s208] %v253
                %v255 = vld [vmem:[%s217 + $0x130] sm:%s208]
                %256 = vst [vmem:[%s218 + $0x90] sm:%s208] %v255
                %v257 = vld [vmem:[%s217 + $0x138] sm:%s208]
                %258 = vst [vmem:[%s218 + $0x98] sm:%s208] %v257
                %v259 = vld [vmem:[%s217 + $0x140] sm:%s208]
                %260 = vst [vmem:[%s218 + $0xa0] sm:%s208] %v259
                %v261 = vld [vmem:[%s217 + $0x148] sm:%s208]
                %262 = vst [vmem:[%s218 + $0xa8] sm:%s208] %v261
                %v263 = vld [vmem:[%s217 + $0x150] sm:%s208]
                %264 = vst [vmem:[%s218 + $0xb0] sm:%s208] %v263
                %v265 = vld [vmem:[%s217 + $0x158] sm:%s208]
                %266 = vst [vmem:[%s218 + $0xb8] sm:%s208] %v265
                %v267 = vld [vmem:[%s217 + $0x1b0] sm:%s208]
                %268 = vst [vmem:[%s218 + $0xc0] sm:%s208] %v267
                %v269 = vld [vmem:[%s217 + $0x1b8] sm:%s208]
                %270 = vst [vmem:[%s218 + $0xc8] sm:%s208] %v269
                %v271 = vld [vmem:[%s217 + $0x1c0] sm:%s208]
                %272 = vst [vmem:[%s218 + $0xd0] sm:%s208] %v271
                %v273 = vld [vmem:[%s217 + $0x1c8] sm:%s208]
                %274 = vst [vmem:[%s218 + $0xd8] sm:%s208] %v273
                %v275 = vld [vmem:[%s217 + $0x1d0] sm:%s208]
                %276 = vst [vmem:[%s218 + $0xe0] sm:%s208] %v275
                %v277 = vld [vmem:[%s217 + $0x1d8] sm:%s208]
                %278 = vst [vmem:[%s218 + $0xe8] sm:%s208] %v277
                %v279 = vld [vmem:[%s217 + $0x1e0] sm:%s208]
                %280 = vst [vmem:[%s218 + $0xf0] sm:%s208] %v279
                %v281 = vld [vmem:[%s217 + $0x1e8] sm:%s208]
                %282 = vst [vmem:[%s218 + $0xf8] sm:%s208] %v281
                %s283 = sadd.s32 1, %s216
                %p284 = scmp.ge.s32.totalorder %s283, %s209
                %s285 = scalar_select %p284, 0, %s283
                %s286 = smul.u32 %s285, 64
                %s287 = smul.u32 %s285, 64
                %s288 = scalar_lea.vmem %s198, %s286
                %s289 = scalar_lea.vmem %s186, %s287 [#allocation2]
              $region45: #{tpu_custom_call.1} parent=39 // loop_footer
                %s213 = sadd.s32 %s211, 1
              $region46: #{tpu_custom_call.1} parent=39 // loop_footer_branch
                %210 = sbr.rel target = $region42
              $region47: #{tpu_custom_call.1} parent=39 // loop_exit
                _
              %s290 = sshrl.u32 %s199, 3
              %s291 = sand.u32 %s199, 7
              %s292 = smul.u32 %s290, 8
              %s293 = smul.u32 8, %s292
              %s294 = scalar_lea.vmem %s198, %s293
              %s295 = smul.u32 8, %s292
              %s296 = scalar_lea.vmem %s186, %s295 [#allocation2]
              // While loop
              $region48: #{tpu_custom_call.1} parent=39 // loop_pre_header
                _
              $region49: #{tpu_custom_call.1} parent=39 // loop_header
                %s298 = sphi 0, %s300
                %p299 = scmp.ge.s32.totalorder %s298, %s291
                %s303 = sphi 0, %s316
                %s304 = sphi %s294, %s319
                %s305 = sphi %s296, %s320
              $region50: #{tpu_custom_call.1} parent=39 // loop_header_branch
                %302 = sbr.rel (%p299) target = $region54
              $region51: #{tpu_custom_call.1} parent=39 // loop_body
                %v306 = vld [vmem:[%s304] sm:%s208]
                %307 = vst [vmem:[%s305] sm:%s208] %v306
                %v308 = vld [vmem:[%s304 + $0x90] sm:%s208]
                %309 = vst [vmem:[%s305 + $0x40] sm:%s208] %v308
                %v310 = vld [vmem:[%s304 + $0x120] sm:%s208]
                %311 = vst [vmem:[%s305 + $0x80] sm:%s208] %v310
                %v312 = vld [vmem:[%s304 + $0x1b0] sm:%s208]
                %313 = vst [vmem:[%s305 + $0xc0] sm:%s208] %v312
                %s314 = sadd.s32 1, %s303
                %p315 = scmp.ge.s32.totalorder %s314, %s291
                %s316 = scalar_select %p315, 0, %s314
                %s317 = smul.u32 %s316, 8
                %s318 = smul.u32 %s316, 8
                %s319 = scalar_lea.vmem %s294, %s317
                %s320 = scalar_lea.vmem %s296, %s318 [#allocation2]
              $region52: #{tpu_custom_call.1} parent=39 // loop_footer
                %s300 = sadd.s32 %s298, 1
              $region53: #{tpu_custom_call.1} parent=39 // loop_footer_branch
                %297 = sbr.rel target = $region49
              $region54: #{tpu_custom_call.1} parent=39 // loop_exit
                _
            $region40: #{tpu_custom_call.1} parent=31 // pred_fallthru
              _
          $region32: #{tpu_custom_call.1} parent=27 // pred_fallthru
            _
          %437 = vnop
        $region28: #{tpu_custom_call.1} parent=23 // pred_fallthru
          _
        // Predicated region
        $region77: #{tpu_custom_call.1} parent=23 // pred_check
          %p438 = pneg %p79
        $region78: #{tpu_custom_call.1} parent=23 // pred_check_branch
          %440 = sbr.rel (%p438) target = $region80
        $region79: #{tpu_custom_call.1} parent=23 // pred_region
          %s441 = sand.u32 %s69, 1
          %s442 = sand.u32 %s69, 1
          %s443 = smul.addr %s442, 32
          %s444 = scalar_lea.vmem [#allocation3], %s443
          %s445 = sadd.s32 %s21, 1
          %s446 = smul.u32 %s445, 4
          %s447 = smul.addr %s446, 2
          %s448 = smul.addr %s20, 72
          %s449 = sadd.s32 %s447, %s448
          %s450 = smul.addr %s449, 8
          %s451 = scalar_lea.vmem %s1, %s450
          // Predicated region
          $region81: #{tpu_custom_call.1} parent=79 // pred_check
            _
          $region82: #{tpu_custom_call.1} parent=79 // pred_check_branch
            %453 = sbr.rel (0) target = $region84
          $region83: #{tpu_custom_call.1} parent=79 // pred_region
            // Predicated region
            $region85: #{tpu_custom_call.1} parent=83 // pred_check
              _
            $region86: #{tpu_custom_call.1} parent=83 // pred_check_branch
              %455 = sbr.rel (0) target = $region88
            $region87: #{tpu_custom_call.1} parent=83 // pred_region
              // Predicated region
              $region100: #{tpu_custom_call.1} parent=87 // pred_check
                _
              $region101: #{tpu_custom_call.1} parent=87 // pred_check_branch
                %477 = sbr.rel (0) target = $region103
              $region102: #{tpu_custom_call.1} parent=87 // pred_region
                loop: start=0, step=1, limit=1
                $region104: #{tpu_custom_call.1} parent=102 // loop_pre_header
                  _
                $region105: #{tpu_custom_call.1} parent=102 // loop_header
                  %s479 = sphi 0, %s483
                  %p480 = scmp.ge.s32.totalorder %s479, 1
                  %s484 = sphi %s451, %s451
                  %s485 = sphi %s444, %s444
                $region106: #{tpu_custom_call.1} parent=102 // loop_header_branch
                  %482 = sbr.rel (%p480) target = $region110
                $region107: #{tpu_custom_call.1} parent=102 // loop_body
                  %v486 = vld [vmem:[%s484] sm:$0xff]
                  %487 = vst [vmem:[%s485] sm:$0xff] %v486
                  %v488 = vld [vmem:[%s484 + $0x8] sm:$0xff]
                  %489 = vst [vmem:[%s485 + $0x8] sm:$0xff] %v488
                  %v490 = vld [vmem:[%s484 + $0x90] sm:$0xff]
                  %491 = vst [vmem:[%s485 + $0x10] sm:$0xff] %v490
                  %v492 = vld [vmem:[%s484 + $0x98] sm:$0xff]
                  %493 = vst [vmem:[%s485 + $0x18] sm:$0xff] %v492
                $region108: #{tpu_custom_call.1} parent=102 // loop_footer
                  %s483 = sadd.s32 1, %s479
                $region109: #{tpu_custom_call.1} parent=102 // loop_footer_branch
                  %478 = sbr.rel target = $region105
                $region110: #{tpu_custom_call.1} parent=102 // loop_exit
                  _
              $region103: #{tpu_custom_call.1} parent=87 // pred_fallthru
                _
              // Predicated region
              $region111: #{tpu_custom_call.1} parent=87 // pred_check
                _
              $region112: #{tpu_custom_call.1} parent=87 // pred_check_branch
                %495 = sbr.rel target = $region114
              $region113: #{tpu_custom_call.1} parent=87 // pred_region
                _
              $region114: #{tpu_custom_call.1} parent=87 // pred_fallthru
                _
            $region88: #{tpu_custom_call.1} parent=83 // pred_fallthru
              _
            // Predicated region
            $region89: #{tpu_custom_call.1} parent=83 // pred_check
              _
            $region90: #{tpu_custom_call.1} parent=83 // pred_check_branch
              %457 = sbr.rel target = $region92
            $region91: #{tpu_custom_call.1} parent=83 // pred_region
              %s459 = ssub.s32 256, 1
              loop: start=0, step=1, limit=1
              $region93: #{tpu_custom_call.1} parent=91 // loop_pre_header
                _
              $region94: #{tpu_custom_call.1} parent=91 // loop_header
                %s461 = sphi 0, %s465
                %p462 = scmp.ge.s32.totalorder %s461, 1
                %s466 = sphi %s451, %s451
                %s467 = sphi %s444, %s444
              $region95: #{tpu_custom_call.1} parent=91 // loop_header_branch
                %464 = sbr.rel (%p462) target = $region99
              $region96: #{tpu_custom_call.1} parent=91 // loop_body
                %v468 = vld [vmem:[%s466] sm:%s459]
                %469 = vst [vmem:[%s467] sm:%s459] %v468
                %v470 = vld [vmem:[%s466 + $0x8] sm:%s459]
                %471 = vst [vmem:[%s467 + $0x8] sm:%s459] %v470
                %v472 = vld [vmem:[%s466 + $0x90] sm:%s459]
                %473 = vst [vmem:[%s467 + $0x10] sm:%s459] %v472
                %v474 = vld [vmem:[%s466 + $0x98] sm:%s459]
                %475 = vst [vmem:[%s467 + $0x18] sm:%s459] %v474
              $region97: #{tpu_custom_call.1} parent=91 // loop_footer
                %s465 = sadd.s32 1, %s461
              $region98: #{tpu_custom_call.1} parent=91 // loop_footer_branch
                %460 = sbr.rel target = $region94
              $region99: #{tpu_custom_call.1} parent=91 // loop_exit
                _
            $region92: #{tpu_custom_call.1} parent=83 // pred_fallthru
              _
          $region84: #{tpu_custom_call.1} parent=79 // pred_fallthru
            _
          %496 = vnop
        $region80: #{tpu_custom_call.1} parent=23 // pred_fallthru
          _
      $region24: #{tpu_custom_call.1} parent=5 // pred_fallthru
        _
      %p497 = scmp.le.s32.totalorder 1, %s13
      %p498 = scmp.lt.s32.totalorder %s13, 5
      %p499 = pnand %p497, %p498
      %p500 = pneg %p499
      // Predicated region
      $region115: #{tpu_custom_call.1} parent=5 // pred_check
        _
      $region116: #{tpu_custom_call.1} parent=5 // pred_check_branch
        %502 = sbr.rel (%p499) target = $region118
      $region117: #{tpu_custom_call.1} parent=5 // pred_region
        %s503 = ssub.s32 %s13, 1
        %s504 = sand.u32 %s40, 1
        %s505 = sand.u32 %s40, 1
        %s506 = smul.addr %s505, 256
        %s507 = scalar_lea.vmem [#allocation2], %s506
        // Predicated region
        $region119: #{tpu_custom_call.1} parent=117 // pred_check
          %p508 = pneg %p53
        $region120: #{tpu_custom_call.1} parent=117 // pred_check_branch
          %510 = sbr.rel (%p508) target = $region122
        $region121: #{tpu_custom_call.1} parent=117 // pred_region
          _
        $region122: #{tpu_custom_call.1} parent=117 // pred_fallthru
          _
        %s511 = sand.u32 %s72, 1
        %s512 = sand.u32 %s72, 1
        %s513 = smul.addr %s512, 32
        %s514 = scalar_lea.vmem [#allocation3], %s513
        // Predicated region
        $region123: #{tpu_custom_call.1} parent=117 // pred_check
          %p515 = pneg %p85
        $region124: #{tpu_custom_call.1} parent=117 // pred_check_branch
          %517 = sbr.rel (%p515) target = $region126
        $region125: #{tpu_custom_call.1} parent=117 // pred_region
          _
        $region126: #{tpu_custom_call.1} parent=117 // pred_fallthru
          _
        %s518 = sand.u32 %s40, 1
        %s519 = sand.u32 %s40, 1
        %s520 = smul.addr %s519, 256
        %s521 = scalar_lea.vmem [#allocation2], %s520
        %p522 = pneg %p53
        %p523 = pneg %p50
        %s524 = sand.u32 %s72, 1
        %s525 = sand.u32 %s72, 1
        %s526 = smul.addr %s525, 32
        %s527 = scalar_lea.vmem [#allocation3], %s526
        %p528 = pneg %p85
        %p529 = pneg %p82
        %p530 = pneg %p106
        %p531 = pneg %p103
        %p532 = pneg %p127
        %p533 = pneg %p124
        %p534 = pneg %p155
        %p535 = pneg %p152
        %s536 = sand.u32 %s142, 1
        %s537 = scalar_lea.sflag [#allocation5], %s536
        %s538 = sand.u32 %s142, 1
        %s539 = smul.addr %s538, 32
        %s540 = scalar_lea.vmem [#allocation4], %s539
        %s541 = smul.u32 4, %s23
        %s542 = ssub.s32 9, %s541
        %p543 = scmp.lt.s32.totalorder %s542, 4
        %s544 = scalar_select %p543, %s542, 4
        %s545 = smul.u32 32, %s544
        %s546 = smul.u32 %s545, 2
        %s547 = sadd.s32 %s23, 1
        %s548 = smul.u32 %s547, 4
        %s549 = smul.u32 4, %s23
        %v550 = vld [vmem:[%s507] sm:$0xff]
        %v551 = vld [vmem:[%s507 + $0x8] sm:$0x1]
        %v552 = vld [vmem:[%s507 + $0x10] sm:$0xff]
        %v553 = vld [vmem:[%s507 + $0x18] sm:$0x1]
        %v554 = vld [vmem:[%s507 + $0x20] sm:$0xff]
        %v555 = vld [vmem:[%s507 + $0x28] sm:$0x1]
        %v556 = vld [vmem:[%s507 + $0x30] sm:$0xff]
        %v557 = vld [vmem:[%s507 + $0x38] sm:$0x1]
        %v558 = vld [vmem:[%s507 + $0x40] sm:$0xff]
        %v559 = vld [vmem:[%s507 + $0x50] sm:$0xff]
        %v560 = vld [vmem:[%s507 + $0x60] sm:$0xff]
        %v561 = vld [vmem:[%s507 + $0x70] sm:$0xff]
        %v562 = vld [vmem:[%s507 + $0x80] sm:$0xff]
        %v563 = vld [vmem:[%s507 + $0x88] sm:$0x1]
        %v564 = vld [vmem:[%s507 + $0x90] sm:$0xff]
        %v565 = vld [vmem:[%s507 + $0x98] sm:$0x1]
        %v566 = vld [vmem:[%s507 + $0xa0] sm:$0xff]
        %v567 = vld [vmem:[%s507 + $0xa8] sm:$0x1]
        %v568 = vld [vmem:[%s507 + $0xb0] sm:$0xff]
        %v569 = vld [vmem:[%s507 + $0xb8] sm:$0x1]
        %v570 = vld [vmem:[%s507 + $0xc0] sm:$0xff]
        %v571 = vld [vmem:[%s507 + $0xd0] sm:$0xff]
        %v572 = vld [vmem:[%s507 + $0xe0] sm:$0xff]
        %v573 = vld [vmem:[%s507 + $0xf0] sm:$0xff]
        %v574 = vld [vmem:[%s514] sm:$0xff]
        %v575 = vld [vmem:[%s514 + $0x8] sm:$0x1]
        %v576 = vld [vmem:[%s514 + $0x10] sm:$0xff]
        %v577 = vld [vmem:[%s2] sm:$0xff]
        %v578 = vld [vmem:[%s2 + $0x8] sm:$0xf]
        %v580 = vrot.slane %v577, 4
        %vm581 = vcmask 31744
        %v583 = vsel %vm581, %v558, 0
        %v586 = vsel %vm581, %v559, 0
        %v589 = vsel %vm581, %v560, 0
        %v592 = vsel %vm581, %v561, 0
        %vm594 = vcmask 1043456
        %v595 = vsel %vm594, %v580, 0
        %597 = vmatpush.msra.mxu0 0.0
        %598 = vmatpush.msra.mxu0 0.0
        %599 = vmatpush.msra.mxu0 0.0
        %600 = vmatpush.msra.mxu0 0.0
        %601 = vmatpush.msra.mxu0 0.0
        %602 = vmatpush.msra.mxu0 0.0
        %603 = vmatpush.msra.mxu0 0.0
        %604 = vmatpush.msra.mxu0 0.0
        %605 = vmatpush.msra.mxu0 0.0
        %606 = vmatpush.msra.mxu0 0.0
        %607 = vmatpush.msra.mxu0 0.0
        %608 = vmatpush.msra.mxu0 0.0
        %609 = vmatpush.msra.mxu0 0.0
        %610 = vmatpush.msra.mxu0 0.0
        %611 = vmatpush.msra.mxu0 0.0
        %612 = vmatpush.msra.mxu0 %v595
        %613 = vmatmul.f32.gmra.mxu0 %v583
        %v614 = vpop.f32.mrf.mxu0
        %v615 = vadd.f32 0.0, %v614
        %616 = vmatmul.f32.gmra.mxu0 %v586
        %v617 = vpop.f32.mrf.mxu0
        %v618 = vadd.f32 0.0, %v617
        %619 = vmatmul.f32.gmra.mxu0 %v589
        %v620 = vpop.f32.mrf.mxu0
        %v621 = vadd.f32 0.0, %v620
        %622 = vmatmul.f32.gmra.mxu0 %v592
        %v623 = vpop.f32.mrf.mxu0
        %v624 = vadd.f32 0.0, %v623
        %625 = vdwg.mxu0
        %v627 = vsel %vm581, %v550, 0
        %v630 = vsel %vm581, %v552, 0
        %v633 = vsel %vm581, %v554, 0
        %v636 = vsel %vm581, %v556, 0
        %v638 = vsel %vm594, %v577, 0
        %640 = vmatpush.msra.mxu0 0.0
        %641 = vmatpush.msra.mxu0 0.0
        %642 = vmatpush.msra.mxu0 0.0
        %643 = vmatpush.msra.mxu0 0.0
        %644 = vmatpush.msra.mxu0 0.0
        %645 = vmatpush.msra.mxu0 0.0
        %646 = vmatpush.msra.mxu0 0.0
        %647 = vmatpush.msra.mxu0 0.0
        %648 = vmatpush.msra.mxu0 0.0
        %649 = vmatpush.msra.mxu0 0.0
        %650 = vmatpush.msra.mxu0 0.0
        %651 = vmatpush.msra.mxu0 0.0
        %652 = vmatpush.msra.mxu0 0.0
        %653 = vmatpush.msra.mxu0 0.0
        %654 = vmatpush.msra.mxu0 0.0
        %655 = vmatpush.msra.mxu0 %v638
        %656 = vmatmul.f32.gmra.mxu0 %v627
        %v657 = vpop.f32.mrf.mxu0
        %v658 = vadd.f32 %v615, %v657
        %659 = vmatmul.f32.gmra.mxu0 %v630
        %v660 = vpop.f32.mrf.mxu0
        %v661 = vadd.f32 %v618, %v660
        %662 = vmatmul.f32.gmra.mxu0 %v633
        %v663 = vpop.f32.mrf.mxu0
        %v664 = vadd.f32 %v621, %v663
        %665 = vmatmul.f32.gmra.mxu0 %v636
        %v666 = vpop.f32.mrf.mxu0
        %v667 = vadd.f32 %v624, %v666
        %668 = vdwg.mxu0
        %vm673 = vcmask 1046528
        %v674 = vrot.slane %v550, 1
        %v675 = vrot.slane %v551, 1
        %v676 = vsel %vm673, %v674, %v675
        %v677 = vrot.slane %v552, 1
        %v678 = vrot.slane %v553, 1
        %v679 = vsel %vm673, %v677, %v678
        %v680 = vrot.slane %v554, 1
        %v681 = vrot.slane %v555, 1
        %v682 = vsel %vm673, %v680, %v681
        %v683 = vrot.slane %v556, 1
        %v684 = vrot.slane %v557, 1
        %v685 = vsel %vm673, %v683, %v684
        %v686 = vsel %vm581, %v676, 0
        %v688 = vsel %vm581, %v679, 0
        %v690 = vsel %vm581, %v682, 0
        %v692 = vsel %vm581, %v685, 0
        %v695 = vsel %vm594, %v578, 0
        %697 = vmatpush.msra.mxu0 0.0
        %698 = vmatpush.msra.mxu0 0.0
        %699 = vmatpush.msra.mxu0 0.0
        %700 = vmatpush.msra.mxu0 0.0
        %701 = vmatpush.msra.mxu0 0.0
        %702 = vmatpush.msra.mxu0 0.0
        %703 = vmatpush.msra.mxu0 0.0
        %704 = vmatpush.msra.mxu0 0.0
        %705 = vmatpush.msra.mxu0 0.0
        %706 = vmatpush.msra.mxu0 0.0
        %707 = vmatpush.msra.mxu0 0.0
        %708 = vmatpush.msra.mxu0 0.0
        %709 = vmatpush.msra.mxu0 0.0
        %710 = vmatpush.msra.mxu0 0.0
        %711 = vmatpush.msra.mxu0 0.0
        %712 = vmatpush.msra.mxu0 %v695
        %713 = vmatmul.f32.gmra.mxu0 %v686
        %v714 = vpop.f32.mrf.mxu0
        %v715 = vadd.f32 0.0, %v714
        %716 = vmatmul.f32.gmra.mxu0 %v688
        %v717 = vpop.f32.mrf.mxu0
        %v718 = vadd.f32 0.0, %v717
        %719 = vmatmul.f32.gmra.mxu0 %v690
        %v720 = vpop.f32.mrf.mxu0
        %v721 = vadd.f32 0.0, %v720
        %722 = vmatmul.f32.gmra.mxu0 %v692
        %v723 = vpop.f32.mrf.mxu0
        %v724 = vadd.f32 0.0, %v723
        %725 = vdwg.mxu0
        %v726 = vadd.f32 %v658, %v715
        %v727 = vadd.f32 %v661, %v718
        %v728 = vadd.f32 %v664, %v721
        %v729 = vadd.f32 %v667, %v724
        %s730 = scalar_lea.vmem %s2, 16
        %v731 = vld [vmem:[%s730] sm:$0xff]
        %v732 = vld [vmem:[%s730 + $0x8] sm:$0xf]
        %v734 = vsel %vm581, %v562, 0
        %v737 = vsel %vm581, %v564, 0
        %v740 = vsel %vm581, %v566, 0
        %v743 = vsel %vm581, %v568, 0
        %v746 = vsel %vm594, %v731, 0
        %748 = vmatpush.msra.mxu0 0.0
        %749 = vmatpush.msra.mxu0 0.0
        %750 = vmatpush.msra.mxu0 0.0
        %751 = vmatpush.msra.mxu0 0.0
        %752 = vmatpush.msra.mxu0 0.0
        %753 = vmatpush.msra.mxu0 0.0
        %754 = vmatpush.msra.mxu0 0.0
        %755 = vmatpush.msra.mxu0 0.0
        %756 = vmatpush.msra.mxu0 0.0
        %757 = vmatpush.msra.mxu0 0.0
        %758 = vmatpush.msra.mxu0 0.0
        %759 = vmatpush.msra.mxu0 0.0
        %760 = vmatpush.msra.mxu0 0.0
        %761 = vmatpush.msra.mxu0 0.0
        %762 = vmatpush.msra.mxu0 0.0
        %763 = vmatpush.msra.mxu0 %v746
        %764 = vmatmul.f32.gmra.mxu0 %v734
        %v765 = vpop.f32.mrf.mxu0
        %v766 = vadd.f32 0.0, %v765
        %767 = vmatmul.f32.gmra.mxu0 %v737
        %v768 = vpop.f32.mrf.mxu0
        %v769 = vadd.f32 0.0, %v768
        %770 = vmatmul.f32.gmra.mxu0 %v740
        %v771 = vpop.f32.mrf.mxu0
        %v772 = vadd.f32 0.0, %v771
        %773 = vmatmul.f32.gmra.mxu0 %v743
        %v774 = vpop.f32.mrf.mxu0
        %v775 = vadd.f32 0.0, %v774
        %776 = vdwg.mxu0
        %v777 = vadd.f32 %v726, %v766
        %v778 = vadd.f32 %v727, %v769
        %v779 = vadd.f32 %v728, %v772
        %v780 = vadd.f32 %v729, %v775
        %v781 = vrot.slane %v731, 4
        %v783 = vsel %vm581, %v570, 0
        %v786 = vsel %vm581, %v571, 0
        %v789 = vsel %vm581, %v572, 0
        %v792 = vsel %vm581, %v573, 0
        %v794 = vsel %vm594, %v781, 0
        %796 = vmatpush.msra.mxu0 0.0
        %797 = vmatpush.msra.mxu0 0.0
        %798 = vmatpush.msra.mxu0 0.0
        %799 = vmatpush.msra.mxu0 0.0
        %800 = vmatpush.msra.mxu0 0.0
        %801 = vmatpush.msra.mxu0 0.0
        %802 = vmatpush.msra.mxu0 0.0
        %803 = vmatpush.msra.mxu0 0.0
        %804 = vmatpush.msra.mxu0 0.0
        %805 = vmatpush.msra.mxu0 0.0
        %806 = vmatpush.msra.mxu0 0.0
        %807 = vmatpush.msra.mxu0 0.0
        %808 = vmatpush.msra.mxu0 0.0
        %809 = vmatpush.msra.mxu0 0.0
        %810 = vmatpush.msra.mxu0 0.0
        %811 = vmatpush.msra.mxu0 %v794
        %812 = vmatmul.f32.gmra.mxu0 %v783
        %v813 = vpop.f32.mrf.mxu0
        %v814 = vadd.f32 0.0, %v813
        %815 = vmatmul.f32.gmra.mxu0 %v786
        %v816 = vpop.f32.mrf.mxu0
        %v817 = vadd.f32 0.0, %v816
        %818 = vmatmul.f32.gmra.mxu0 %v789
        %v819 = vpop.f32.mrf.mxu0
        %v820 = vadd.f32 0.0, %v819
        %821 = vmatmul.f32.gmra.mxu0 %v792
        %v822 = vpop.f32.mrf.mxu0
        %v823 = vadd.f32 0.0, %v822
        %824 = vdwg.mxu0
        %v825 = vadd.f32 %v777, %v814
        %v826 = vadd.f32 %v778, %v817
        %v827 = vadd.f32 %v779, %v820
        %v828 = vadd.f32 %v780, %v823
        %v833 = vrot.slane %v562, 1
        %v834 = vrot.slane %v563, 1
        %v835 = vsel %vm673, %v833, %v834
        %v836 = vrot.slane %v564, 1
        %v837 = vrot.slane %v565, 1
        %v838 = vsel %vm673, %v836, %v837
        %v839 = vrot.slane %v566, 1
        %v840 = vrot.slane %v567, 1
        %v841 = vsel %vm673, %v839, %v840
        %v842 = vrot.slane %v568, 1
        %v843 = vrot.slane %v569, 1
        %v844 = vsel %vm673, %v842, %v843
        %v845 = vsel %vm581, %v835, 0
        %v847 = vsel %vm581, %v838, 0
        %v849 = vsel %vm581, %v841, 0
        %v851 = vsel %vm581, %v844, 0
        %v854 = vsel %vm594, %v732, 0
        %856 = vmatpush.msra.mxu0 0.0
        %857 = vmatpush.msra.mxu0 0.0
        %858 = vmatpush.msra.mxu0 0.0
        %859 = vmatpush.msra.mxu0 0.0
        %860 = vmatpush.msra.mxu0 0.0
        %861 = vmatpush.msra.mxu0 0.0
        %862 = vmatpush.msra.mxu0 0.0
        %863 = vmatpush.msra.mxu0 0.0
        %864 = vmatpush.msra.mxu0 0.0
        %865 = vmatpush.msra.mxu0 0.0
        %866 = vmatpush.msra.mxu0 0.0
        %867 = vmatpush.msra.mxu0 0.0
        %868 = vmatpush.msra.mxu0 0.0
        %869 = vmatpush.msra.mxu0 0.0
        %870 = vmatpush.msra.mxu0 0.0
        %871 = vmatpush.msra.mxu0 %v854
        %872 = vmatmul.f32.gmra.mxu0 %v845
        %v873 = vpop.f32.mrf.mxu0
        %v874 = vadd.f32 0.0, %v873
        %875 = vmatmul.f32.gmra.mxu0 %v847
        %v876 = vpop.f32.mrf.mxu0
        %v877 = vadd.f32 0.0, %v876
        %878 = vmatmul.f32.gmra.mxu0 %v849
        %v879 = vpop.f32.mrf.mxu0
        %v880 = vadd.f32 0.0, %v879
        %881 = vmatmul.f32.gmra.mxu0 %v851
        %v882 = vpop.f32.mrf.mxu0
        %v883 = vadd.f32 0.0, %v882
        %884 = vdwg.mxu0
        %v885 = vadd.f32 %v825, %v874
        %v886 = vadd.f32 %v826, %v877
        %v887 = vadd.f32 %v827, %v880
        %v888 = vadd.f32 %v828, %v883
        %s889 = scalar_lea.vmem %s2, 32
        %v890 = vld [vmem:[%s889] sm:$0xff]
        %v891 = vld [vmem:[%s889 + $0x8] sm:$0xf]
        %v893 = vsel %vm581, %v574, 0
        %v896 = vsel %vm594, %v890, 0
        %898 = vmatpush.msra.mxu0 0.0
        %899 = vmatpush.msra.mxu0 0.0
        %900 = vmatpush.msra.mxu0 0.0
        %901 = vmatpush.msra.mxu0 0.0
        %902 = vmatpush.msra.mxu0 0.0
        %903 = vmatpush.msra.mxu0 0.0
        %904 = vmatpush.msra.mxu0 0.0
        %905 = vmatpush.msra.mxu0 0.0
        %906 = vmatpush.msra.mxu0 0.0
        %907 = vmatpush.msra.mxu0 0.0
        %908 = vmatpush.msra.mxu0 0.0
        %909 = vmatpush.msra.mxu0 0.0
        %910 = vmatpush.msra.mxu0 0.0
        %911 = vmatpush.msra.mxu0 0.0
        %912 = vmatpush.msra.mxu0 0.0
        %913 = vmatpush.msra.mxu0 %v896
        %914 = vmatmul.f32.gmra.mxu0 %v630
        %v915 = vpop.f32.mrf.mxu0
        %v916 = vadd.f32 0.0, %v915
        %917 = vmatmul.f32.gmra.mxu0 %v633
        %v918 = vpop.f32.mrf.mxu0
        %v919 = vadd.f32 0.0, %v918
        %920 = vmatmul.f32.gmra.mxu0 %v636
        %v921 = vpop.f32.mrf.mxu0
        %v922 = vadd.f32 0.0, %v921
        %923 = vmatmul.f32.gmra.mxu0 %v893
        %v924 = vpop.f32.mrf.mxu0
        %v925 = vadd.f32 0.0, %v924
        %926 = vdwg.mxu0
        %v927 = vadd.f32 %v885, %v916
        %v928 = vadd.f32 %v886, %v919
        %v929 = vadd.f32 %v887, %v922
        %v930 = vadd.f32 %v888, %v925
        %v931 = vrot.slane %v890, 4
        %v933 = vsel %vm581, %v576, 0
        %v935 = vsel %vm594, %v931, 0
        %937 = vmatpush.msra.mxu0 0.0
        %938 = vmatpush.msra.mxu0 0.0
        %939 = vmatpush.msra.mxu0 0.0
        %940 = vmatpush.msra.mxu0 0.0
        %941 = vmatpush.msra.mxu0 0.0
        %942 = vmatpush.msra.mxu0 0.0
        %943 = vmatpush.msra.mxu0 0.0
        %944 = vmatpush.msra.mxu0 0.0
        %945 = vmatpush.msra.mxu0 0.0
        %946 = vmatpush.msra.mxu0 0.0
        %947 = vmatpush.msra.mxu0 0.0
        %948 = vmatpush.msra.mxu0 0.0
        %949 = vmatpush.msra.mxu0 0.0
        %950 = vmatpush.msra.mxu0 0.0
        %951 = vmatpush.msra.mxu0 0.0
        %952 = vmatpush.msra.mxu0 %v935
        %953 = vmatmul.f32.gmra.mxu0 %v586
        %v954 = vpop.f32.mrf.mxu0
        %v955 = vadd.f32 0.0, %v954
        %956 = vmatmul.f32.gmra.mxu0 %v589
        %v957 = vpop.f32.mrf.mxu0
        %v958 = vadd.f32 0.0, %v957
        %959 = vmatmul.f32.gmra.mxu0 %v592
        %v960 = vpop.f32.mrf.mxu0
        %v961 = vadd.f32 0.0, %v960
        %962 = vmatmul.f32.gmra.mxu0 %v933
        %v963 = vpop.f32.mrf.mxu0
        %v964 = vadd.f32 0.0, %v963
        %965 = vdwg.mxu0
        %v966 = vadd.f32 %v927, %v955
        %v967 = vadd.f32 %v928, %v958
        %v968 = vadd.f32 %v929, %v961
        %v969 = vadd.f32 %v930, %v964
        %v971 = vrot.slane %v574, 1
        %v972 = vrot.slane %v575, 1
        %v973 = vsel %vm673, %v971, %v972
        %v974 = vsel %vm581, %v973, 0
        %v977 = vsel %vm594, %v891, 0
        %979 = vmatpush.msra.mxu0 0.0
        %980 = vmatpush.msra.mxu0 0.0
        %981 = vmatpush.msra.mxu0 0.0
        %982 = vmatpush.msra.mxu0 0.0
        %983 = vmatpush.msra.mxu0 0.0
        %984 = vmatpush.msra.mxu0 0.0
        %985 = vmatpush.msra.mxu0 0.0
        %986 = vmatpush.msra.mxu0 0.0
        %987 = vmatpush.msra.mxu0 0.0
        %988 = vmatpush.msra.mxu0 0.0
        %989 = vmatpush.msra.mxu0 0.0
        %990 = vmatpush.msra.mxu0 0.0
        %991 = vmatpush.msra.mxu0 0.0
        %992 = vmatpush.msra.mxu0 0.0
        %993 = vmatpush.msra.mxu0 0.0
        %994 = vmatpush.msra.mxu0 %v977
        %995 = vmatmul.f32.gmra.mxu0 %v688
        %v996 = vpop.f32.mrf.mxu0
        %v997 = vadd.f32 0.0, %v996
        %998 = vmatmul.f32.gmra.mxu0 %v690
        %v999 = vpop.f32.mrf.mxu0
        %v1000 = vadd.f32 0.0, %v999
        %1001 = vmatmul.f32.gmra.mxu0 %v692
        %v1002 = vpop.f32.mrf.mxu0
        %v1003 = vadd.f32 0.0, %v1002
        %1004 = vmatmul.f32.gmra.mxu0 %v974
        %v1005 = vpop.f32.mrf.mxu0
        %v1006 = vadd.f32 0.0, %v1005
        %1007 = vdwg.mxu0
        %v1008 = vadd.f32 %v966, %v997
        %v1009 = vadd.f32 %v967, %v1000
        %v1010 = vadd.f32 %v968, %v1003
        %v1011 = vadd.f32 %v969, %v1006
        %v1012 = vld [vmem:[%s3] sm:$0x1]
        %v1014 = vperm.slane %v1012, 0
        %v1016 = vadd.f32 %v1008, %v1014
        %v1017 = vadd.f32 %v1009, %v1014
        %v1018 = vadd.f32 %v1010, %v1014
        %v1019 = vadd.f32 %v1011, %v1014
        %1020 = vst [vmem:[%s540] sm:$0xff] %v1016
        %1021 = vst [vmem:[%s540 + $0x8] sm:$0xff] %v1017
        %1022 = vst [vmem:[%s540 + $0x10] sm:$0xff] %v1018
        %1023 = vst [vmem:[%s540 + $0x18] sm:$0xff] %v1019
        %s1024 = sand.u32 %s142, 1
        %s1025 = scalar_lea.sflag [#allocation5], %s1024
        %s1026 = sand.u32 %s142, 1
        %s1027 = smul.addr %s1026, 32
        %s1028 = scalar_lea.vmem [#allocation4], %s1027
        // Predicated region
        $region127: #{tpu_custom_call.1} parent=117 // pred_check
          %p1029 = pneg %p152
        $region128: #{tpu_custom_call.1} parent=117 // pred_check_branch
          %1031 = sbr.rel (%p1029) target = $region130
        $region129: #{tpu_custom_call.1} parent=117 // pred_region
          %s1032 = smul.u32 4, %s23
          %1034 = vsyncadd %s1025, 0
          %s1035 = smul.addr %s22, 8
          %s1036 = sadd.s32 %s1032, %s1035
          %s1037 = smul.addr %s1036, 8
          %s1038 = scalar_lea.hbm %s4, %s1037
          %s1039 = sshll.u32 %s1028, 4
          %s1040 = int_to_ptr.vmem [resolvable:$true] %s1039
          %s1041 = sshll.u32 %s1038, 4
          %s1042 = int_to_ptr.hbm [resolvable:$true] %s1041
          %1047 = dma.vmem_to_hbm [thread:$0]  %s1040, 512, %s1042, %s1025, 128, 128, 8
        $region130: #{tpu_custom_call.1} parent=117 // pred_fallthru
          _
      $region118: #{tpu_custom_call.1} parent=5 // pred_fallthru
        _
      %p1048 = scmp.le.s32.totalorder 2, %s13
      // Predicated region
      $region131: #{tpu_custom_call.1} parent=5 // pred_check
        %p1049 = pneg %p1048
      $region132: #{tpu_custom_call.1} parent=5 // pred_check_branch
        %1051 = sbr.rel (%p1049) target = $region134
      $region133: #{tpu_custom_call.1} parent=5 // pred_region
        %s1052 = ssub.s32 %s13, 2
        // Predicated region
        $region135: #{tpu_custom_call.1} parent=133 // pred_check
          %p1053 = pneg %p158
        $region136: #{tpu_custom_call.1} parent=133 // pred_check_branch
          %1055 = sbr.rel (%p1053) target = $region138
        $region137: #{tpu_custom_call.1} parent=133 // pred_region
          %s1056 = sand.u32 %s143, 1
          %s1057 = scalar_lea.sflag [#allocation5], %s1056
          %s1058 = sand.u32 %s143, 1
          %s1059 = smul.addr %s1058, 32
          %s1060 = scalar_lea.vmem [#allocation4], %s1059
          %1062 = dma.done %s1057, 512
        $region138: #{tpu_custom_call.1} parent=133 // pred_fallthru
          _
      $region134: #{tpu_custom_call.1} parent=5 // pred_fallthru
        _
    $region6: #{tpu_custom_call.1} parent=1 // loop_footer
      %s17 = sadd.s32 1, %s13
    $region7: #{tpu_custom_call.1} parent=1 // loop_footer_branch
      %12 = sbr.rel target = $region3
    $region8: #{tpu_custom_call.1} parent=1 // loop_exit
      _
    %1063 = vsyncpa [#allocation5], 1
    %s1064 = scalar_lea.sflag [#allocation5], 1
    %1065 = vsyncpa %s1064, 1

</llo_original>
